<compile_context>
chip_gen: v6e
topology: v6e:2x2x1
jax: 0.10.0
libtpu: 0.0.40
codegen_flags: <defaults>
</compile_context>

<pallas_src>
import jax
import jax.numpy as jnp
from jax import lax
from jax.experimental import pallas as pl
from jax.experimental.pallas import tpu as pltpu


# ----------------------------------------------------------------------------
# Fused Pallas kernel: all layers, all directions, one call, no grid.
# ----------------------------------------------------------------------------
def _make_extractor_kernel(num_layers, num_dirs, hidden_dim, seq_len, batch):
    H = hidden_dim
    nd = num_dirs
    G = nd * H            # width of one gate group (all directions stacked)
    T = seq_len
    B = batch

    def kernel(*refs):
        # refs = (x_ref, w_ih_0, w_hh_0, b_0, ..., w_ih_{L-1}, w_hh_{L-1},
        #         b_{L-1}, out_ref)
        x_ref = refs[0]
        out_ref = refs[-1]            # (T*B, G); also used as inter-layer buf
        w_refs = refs[1:-1]

        # Hoisted lane masks (bidirectional only).
        if nd == 2:
            lane4 = lax.broadcasted_iota(jnp.int32, (B, 4 * G), 1)
            fwd_mask4 = (lane4 % G) < H        # forward-direction gate lanes
            lane1 = lax.broadcasted_iota(jnp.int32, (B, G), 1)
            fwd_mask1 = lane1 < H              # forward-direction h lanes

        x2d = x_ref[...]                        # (T*B, D_in) for layer 0
        for layer in range(num_layers):
            w_ih = w_refs[3 * layer][...]       # (D_in_l, 4G)  gate-major cols
            w_hh = w_refs[3 * layer + 1][...]   # (G, 4G)       block-diagonal
            b = w_refs[3 * layer + 2][...]      # (1, 4G)

            # Hoisted input projection: one MXU matmul for all timesteps.
            gx = jnp.dot(x2d, w_ih,
                         preferred_element_type=jnp.float32) + b   # (T*B, 4G)

            h = jnp.zeros((B, G), jnp.float32)  # [h_fwd | h_bwd]
            c = jnp.zeros((B, G), jnp.float32)
            h_steps = []
            # TODO(synk): for large T switch to lax.fori_loop(..., unroll=k)
            # with a VMEM scratch to bound code size / vreg live ranges.
            for s in range(T):                  # static full unroll (T small)
                if nd == 2:
                    # fwd direction consumes time s, bwd consumes time T-1-s.
                    row_f = gx[s * B:(s + 1) * B, :]
                    row_b = gx[(T - 1 - s) * B:(T - s) * B, :]
                    gates_x = jnp.where(fwd_mask4, row_f, row_b)
                else:
                    gates_x = gx[s * B:(s + 1) * B, :]
                # Single fused recurrence matmul: (B, G) @ (G, 4G).
                gates = gates_x + jnp.dot(h, w_hh,
                                          preferred_element_type=jnp.float32)
                # One EUP pass over the full gates vreg; g-gate columns were
                # pre-scaled by 2, so tanh(z) = 2*sigmoid(2z) - 1.
                sg = jax.nn.sigmoid(gates)
                i = sg[:, 0 * G:1 * G]
                f = sg[:, 1 * G:2 * G]
                g = 2.0 * sg[:, 2 * G:3 * G] - 1.0
                o = sg[:, 3 * G:4 * G]
                c = f * c + i * g
                h = o * jnp.tanh(c)
                h_steps.append(h)

            # Re-pair directions to original time order (bwd half of step s
            # corresponds to time T-1-s) and write lane-dense rows into the
            # on-chip buffer; no HBM traffic between layers.
            for t in range(T):
                if nd == 2:
                    row = jnp.where(fwd_mask1, h_steps[t], h_steps[T - 1 - t])
                else:
                    row = h_steps[t]
                out_ref[t * B:(t + 1) * B, :] = row

            if layer + 1 < num_layers:
                x2d = out_ref[...]              # next layer input, (T*B, G)

    return kernel


def extractor_forward(x_btd, packed_params, *, hidden_dim, bidirectional):
    """x_btd: (B, T, D_in) -> (B, T, num_directions * hidden_dim)."""
    nd = 2 if bidirectional else 1
    B, T, d_in = x_btd.shape
    H = hidden_dim
    G = nd * H
    num_layers = len(packed_params)

    # Flatten (T, B, D) outside the kernel (free XLA layout change).
    x2d = jnp.transpose(x_btd, (1, 0, 2)).reshape(T * B, d_in)

    flat_weights = []
    for p in packed_params:
        flat_weights.extend(p)                  # (w_ih_cat, w_hh_blk, b_cat)

    kernel = _make_extractor_kernel(num_layers, nd, H, T, B)
    out2d = pl.pallas_call(
        kernel,
        out_shape=jax.ShapeDtypeStruct((T * B, G), jnp.float32),
        # Whole arrays resident in VMEM (total weights here are ~KBs). Set an
        # explicit scoped-VMEM budget so the same code scales on v7x (64 MiB).
        compiler_params=pltpu.CompilerParams(vmem_limit_bytes=32 * 1024 * 1024),
    )(x2d, *flat_weights)

    return out2d.reshape(T, B, G).transpose(1, 0, 2)


# ----------------------------------------------------------------------------
# Parameter construction & packing.
# ----------------------------------------------------------------------------
def make_raw_lstm_params(key, *, input_dim, hidden_dim, num_layers,
                         bidirectional):
    """PyTorch-layout params: per layer, per direction (w_ih, w_hh, b_ih, b_hh)."""
    nd = 2 if bidirectional else 1
    k = 1.0 / float(hidden_dim) ** 0.5
    params = []
    for layer in range(num_layers):
        d_in = input_dim if layer == 0 else hidden_dim * nd
        dirs = []
        for _ in range(nd):
            key, k1, k2, k3, k4 = jax.random.split(key, 5)
            w_ih = jax.random.uniform(k1, (4 * hidden_dim, d_in),
                                      jnp.float32, -k, k)
            w_hh = jax.random.uniform(k2, (4 * hidden_dim, hidden_dim),
                                      jnp.float32, -k, k)
            b_ih = jax.random.uniform(k3, (4 * hidden_dim,), jnp.float32, -k, k)
            b_hh = jax.random.uniform(k4, (4 * hidden_dim,), jnp.float32, -k, k)
            dirs.append((w_ih, w_hh, b_ih, b_hh))
        params.append(dirs)
    return params


def pack_params(raw_params, *, hidden_dim, bidirectional):
    """One-time transform into the fused kernel layout.

    Columns are gate-major across directions: [i_f i_b | f_f f_b | g_f g_b |
    o_f o_b].  W_hh is block-diagonal over directions.  g-gate columns are
    pre-scaled by 2 (tanh(x) = 2*sigmoid(2x) - 1).
    """
    H = hidden_dim
    nd = 2 if bidirectional else 1
    G = nd * H
    packed = []
    for layer_dirs in raw_params:
        d_in = layer_dirs[0][0].shape[1]
        w_ih_cat = jnp.zeros((d_in, 4 * G), jnp.float32)
        w_hh_blk = jnp.zeros((G, 4 * G), jnp.float32)
        b_cat = jnp.zeros((1, 4 * G), jnp.float32)
        for d, (w_ih, w_hh, b_ih, b_hh) in enumerate(layer_dirs):
            bias = b_ih + b_hh
            for q in range(4):                      # gate order i, f, g, o
                scale = 2.0 if q == 2 else 1.0
                col = q * G + d * H
                w_ih_cat = w_ih_cat.at[:, col:col + H].set(
                    scale * w_ih[q * H:(q + 1) * H, :].T)
                w_hh_blk = w_hh_blk.at[d * H:(d + 1) * H, col:col + H].set(
                    scale * w_hh[q * H:(q + 1) * H, :].T)
                b_cat = b_cat.at[0, col:col + H].set(
                    scale * bias[q * H:(q + 1) * H])
        packed.append((w_ih_cat, w_hh_blk, b_cat))
    return packed


# ----------------------------------------------------------------------------
# Pure-JAX reference (correctness check), from raw PyTorch-layout params.
# ----------------------------------------------------------------------------
def _lstm_layer_ref(x_tbd, w_ih, w_hh, b_ih, b_hh, hidden_dim):
    H = hidden_dim
    B = x_tbd.shape[1]
    w_ih_t, w_hh_t = w_ih.T, w_hh.T
    bias = (b_ih + b_hh)[None, :]

    def step(carry, x_t):
        h, c = carry
        gates = x_t @ w_ih_t + h @ w_hh_t + bias
        i = jax.nn.sigmoid(gates[:, 0 * H:1 * H])
        f = jax.nn.sigmoid(gates[:, 1 * H:2 * H])
        g = jnp.tanh(gates[:, 2 * H:3 * H])
        o = jax.nn.sigmoid(gates[:, 3 * H:4 * H])
        c = f * c + i * g
        h = o * jnp.tanh(c)
        return (h, c), h

    h0 = jnp.zeros((B, H), jnp.float32)
    c0 = jnp.zeros((B, H), jnp.float32)
    (_, _), hs = lax.scan(step, (h0, c0), x_tbd)
    return hs


def extractor_forward_ref(x_btd, raw_params, *, hidden_dim, bidirectional):
    nd = 2 if bidirectional else 1
    layer_in = jnp.transpose(x_btd, (1, 0, 2))
    for dirs in raw_params:
        outs = []
        for d in range(nd):
            w_ih, w_hh, b_ih, b_hh = dirs[d]
            x_dir = layer_in if d == 0 else layer_in[::-1]
            hs = _lstm_layer_ref(x_dir, w_ih, w_hh, b_ih, b_hh, hidden_dim)
            if d == 1:
                hs = hs[::-1]
            outs.append(hs)
        layer_in = jnp.concatenate(outs, axis=-1)
    return jnp.transpose(layer_in, (1, 0, 2))


# ----------------------------------------------------------------------------
# Self-test.
# ----------------------------------------------------------------------------
if __name__ == "__main__":
    # Synthetic config standing in for conf.Beat*Change_LSTM_Opt.
    BATCH = 1          # module's init_hidden() uses batch_size=1
    SEQ = 8
    INPUT_DIM = 16     # input_channel_dim
    HIDDEN_DIM = 32
    NUM_LAYERS = 2

    key = jax.random.PRNGKey(0)
    key, k_x, k_p1, k_p2 = jax.random.split(key, 4)
    x = jax.random.normal(k_x, (BATCH, SEQ, INPUT_DIM), jnp.float32)

    # --- bidirectional (main config) ---
    raw_bi = make_raw_lstm_params(k_p1, input_dim=INPUT_DIM,
                                  hidden_dim=HIDDEN_DIM,
                                  num_layers=NUM_LAYERS, bidirectional=True)
    packed_bi = pack_params(raw_bi, hidden_dim=HIDDEN_DIM, bidirectional=True)
    out = extractor_forward(x, packed_bi, hidden_dim=HIDDEN_DIM,
                            bidirectional=True)
    out = jax.block_until_ready(out)
    out_ref = extractor_forward_ref(x, raw_bi, hidden_dim=HIDDEN_DIM,
                                    bidirectional=True)
    assert out.shape == (BATCH, SEQ, 2 * HIDDEN_DIM)
    assert jnp.allclose(out, out_ref, atol=1e-4, rtol=1e-4), "bidir mismatch"

    # --- unidirectional path (same fused kernel) ---
    raw_uni = make_raw_lstm_params(k_p2, input_dim=INPUT_DIM,
                                   hidden_dim=HIDDEN_DIM,
                                   num_layers=NUM_LAYERS, bidirectional=False)
    packed_uni = pack_params(raw_uni, hidden_dim=HIDDEN_DIM,
                             bidirectional=False)
    out_u = extractor_forward(x, packed_uni, hidden_dim=HIDDEN_DIM,
                              bidirectional=False)
    out_u = jax.block_until_ready(out_u)
    out_u_ref = extractor_forward_ref(x, raw_uni, hidden_dim=HIDDEN_DIM,
                                      bidirectional=False)
    assert out_u.shape == (BATCH, SEQ, HIDDEN_DIM)
    assert jnp.allclose(out_u, out_u_ref, atol=1e-4, rtol=1e-4), "uni mismatch"

    print("KERNEL_OK")
</pallas_src>

<mosaic_0001>
module attributes {stable_mosaic.version = 11 : i64} {
  func.func @kernel(%arg0: memref<8x16xf32, #tpu.memory_space<vmem>>, %arg1: memref<16x256xf32, #tpu.memory_space<vmem>>, %arg2: memref<64x256xf32, #tpu.memory_space<vmem>>, %arg3: memref<1x256xf32, #tpu.memory_space<vmem>>, %arg4: memref<64x256xf32, #tpu.memory_space<vmem>>, %arg5: memref<64x256xf32, #tpu.memory_space<vmem>>, %arg6: memref<1x256xf32, #tpu.memory_space<vmem>>, %arg7: memref<8x64xf32, #tpu.memory_space<vmem>>) attributes {dimension_semantics = [], scalar_prefetch = 0 : i64, scratch_operands = 0 : i64, tpu.core_type = #tpu.core_type<tc>} {
    %0 = tpu.iota {dimensions = array<i32: 1>} : vector<1x256xi32>
    %c64_i32 = arith.constant 64 : i32
    %c0_i32 = arith.constant 0 : i32
    %1 = arith.cmpi eq, %c64_i32, %c0_i32 : i32
    %c1_i32 = arith.constant 1 : i32
    %2 = arith.select %1, %c1_i32, %c64_i32 : i32
    %3 = vector.broadcast %2 : i32 to vector<1x256xi32>
    %4 = arith.remsi %0, %3 : vector<1x256xi32>
    %c0_i32_0 = arith.constant 0 : i32
    %5 = vector.broadcast %c0_i32_0 : i32 to vector<1x256xi32>
    %6 = arith.cmpi ne, %4, %5 : vector<1x256xi32>
    %c0_i32_1 = arith.constant 0 : i32
    %7 = vector.broadcast %c0_i32_1 : i32 to vector<1x256xi32>
    %8 = arith.cmpi slt, %4, %7 : vector<1x256xi32>
    %c0_i32_2 = arith.constant 0 : i32
    %9 = arith.cmpi slt, %2, %c0_i32_2 : i32
    %10 = vector.broadcast %9 : i1 to vector<1x256xi1>
    %11 = vector.broadcast %10 : vector<1x256xi1> to vector<1x256xi1>
    %12 = arith.xori %8, %11 : vector<1x256xi1>
    %13 = arith.andi %12, %6 : vector<1x256xi1>
    %14 = vector.broadcast %2 : i32 to vector<1x256xi32>
    %15 = arith.addi %4, %14 : vector<1x256xi32>
    %16 = arith.select %13, %15, %4 : vector<1x256xi1>, vector<1x256xi32>
    %c32_i32 = arith.constant 32 : i32
    %17 = vector.broadcast %c32_i32 : i32 to vector<1x256xi32>
    %18 = arith.cmpi slt, %16, %17 : vector<1x256xi32>
    %19 = tpu.iota {dimensions = array<i32: 1>} : vector<1x64xi32>
    %c32_i32_3 = arith.constant 32 : i32
    %20 = vector.broadcast %c32_i32_3 : i32 to vector<1x64xi32>
    %21 = arith.cmpi slt, %19, %20 : vector<1x64xi32>
    %c0 = arith.constant 0 : index
    %c0_4 = arith.constant 0 : index
    %22 = vector.load %arg0[%c0, %c0_4] : memref<8x16xf32, #tpu.memory_space<vmem>>, vector<8x16xf32>
    %c0_5 = arith.constant 0 : index
    %c0_6 = arith.constant 0 : index
    %23 = vector.load %arg1[%c0_5, %c0_6] : memref<16x256xf32, #tpu.memory_space<vmem>>, vector<16x256xf32>
    %c0_7 = arith.constant 0 : index
    %c0_8 = arith.constant 0 : index
    %24 = vector.load %arg2[%c0_7, %c0_8] : memref<64x256xf32, #tpu.memory_space<vmem>>, vector<64x256xf32>
    %c0_9 = arith.constant 0 : index
    %c0_10 = arith.constant 0 : index
    %25 = vector.load %arg3[%c0_9, %c0_10] : memref<1x256xf32, #tpu.memory_space<vmem>>, vector<1x256xf32>
    %cst = arith.constant dense<0.000000e+00> : vector<8x256xf32>
    %26 = tpu.matmul %22, %23, %cst {dimension_numbers = #tpu.dot_dimension_numbers<[1], [0], [0], [1], [0, 0, 1, 1], [], []>} : vector<8x16xf32>, vector<16x256xf32>, vector<8x256xf32> -> vector<8x256xf32>
    %27 = vector.broadcast %25 : vector<1x256xf32> to vector<8x256xf32>
    %28 = arith.addf %26, %27 : vector<8x256xf32>
    %cst_11 = arith.constant 0.000000e+00 : f32
    %29 = vector.broadcast %cst_11 : f32 to vector<1x64xf32>
    %cst_12 = arith.constant 0.000000e+00 : f32
    %30 = vector.broadcast %cst_12 : f32 to vector<1x64xf32>
    %31 = vector.extract_strided_slice %28 {offsets = [0, 0], sizes = [1, 256], strides = [1, 1]} : vector<8x256xf32> to vector<1x256xf32>
    %32 = vector.extract_strided_slice %28 {offsets = [7, 0], sizes = [1, 256], strides = [1, 1]} : vector<8x256xf32> to vector<1x256xf32>
    %33 = arith.select %18, %31, %32 : vector<1x256xi1>, vector<1x256xf32>
    %cst_13 = arith.constant dense<0.000000e+00> : vector<1x256xf32>
    %34 = tpu.matmul %29, %24, %cst_13 {dimension_numbers = #tpu.dot_dimension_numbers<[1], [0], [0], [1], [0, 0, 1, 1], [], []>} : vector<1x64xf32>, vector<64x256xf32>, vector<1x256xf32> -> vector<1x256xf32>
    %35 = arith.addf %33, %34 : vector<1x256xf32>
    %36 = arith.negf %35 : vector<1x256xf32>
    %37 = math.exp %36 : vector<1x256xf32>
    %cst_14 = arith.constant 1.000000e+00 : f32
    %38 = vector.broadcast %cst_14 : f32 to vector<1x256xf32>
    %39 = arith.addf %38, %37 : vector<1x256xf32>
    %40 = arith.divf %38, %39 : vector<1x256xf32>
    %41 = vector.extract_strided_slice %40 {offsets = [0, 0], sizes = [1, 64], strides = [1, 1]} : vector<1x256xf32> to vector<1x64xf32>
    %42 = vector.extract_strided_slice %40 {offsets = [0, 64], sizes = [1, 64], strides = [1, 1]} : vector<1x256xf32> to vector<1x64xf32>
    %43 = vector.extract_strided_slice %40 {offsets = [0, 128], sizes = [1, 64], strides = [1, 1]} : vector<1x256xf32> to vector<1x64xf32>
    %cst_15 = arith.constant 2.000000e+00 : f32
    %44 = vector.broadcast %cst_15 : f32 to vector<1x64xf32>
    %45 = arith.mulf %44, %43 : vector<1x64xf32>
    %cst_16 = arith.constant 1.000000e+00 : f32
    %46 = vector.broadcast %cst_16 : f32 to vector<1x64xf32>
    %47 = arith.subf %45, %46 : vector<1x64xf32>
    %48 = vector.extract_strided_slice %40 {offsets = [0, 192], sizes = [1, 64], strides = [1, 1]} : vector<1x256xf32> to vector<1x64xf32>
    %49 = arith.mulf %42, %30 : vector<1x64xf32>
    %50 = arith.mulf %41, %47 : vector<1x64xf32>
    %51 = arith.addf %49, %50 : vector<1x64xf32>
    %52 = math.tanh %51 : vector<1x64xf32>
    %53 = arith.mulf %48, %52 : vector<1x64xf32>
    %54 = vector.extract_strided_slice %28 {offsets = [1, 0], sizes = [1, 256], strides = [1, 1]} : vector<8x256xf32> to vector<1x256xf32>
    %55 = vector.extract_strided_slice %28 {offsets = [6, 0], sizes = [1, 256], strides = [1, 1]} : vector<8x256xf32> to vector<1x256xf32>
    %56 = arith.select %18, %54, %55 : vector<1x256xi1>, vector<1x256xf32>
    %cst_17 = arith.constant dense<0.000000e+00> : vector<1x256xf32>
    %57 = tpu.matmul %53, %24, %cst_17 {dimension_numbers = #tpu.dot_dimension_numbers<[1], [0], [0], [1], [0, 0, 1, 1], [], []>} : vector<1x64xf32>, vector<64x256xf32>, vector<1x256xf32> -> vector<1x256xf32>
    %58 = arith.addf %56, %57 : vector<1x256xf32>
    %59 = arith.negf %58 : vector<1x256xf32>
    %60 = math.exp %59 : vector<1x256xf32>
    %cst_18 = arith.constant 1.000000e+00 : f32
    %61 = vector.broadcast %cst_18 : f32 to vector<1x256xf32>
    %62 = arith.addf %61, %60 : vector<1x256xf32>
    %63 = arith.divf %61, %62 : vector<1x256xf32>
    %64 = vector.extract_strided_slice %63 {offsets = [0, 0], sizes = [1, 64], strides = [1, 1]} : vector<1x256xf32> to vector<1x64xf32>
    %65 = vector.extract_strided_slice %63 {offsets = [0, 64], sizes = [1, 64], strides = [1, 1]} : vector<1x256xf32> to vector<1x64xf32>
    %66 = vector.extract_strided_slice %63 {offsets = [0, 128], sizes = [1, 64], strides = [1, 1]} : vector<1x256xf32> to vector<1x64xf32>
    %cst_19 = arith.constant 2.000000e+00 : f32
    %67 = vector.broadcast %cst_19 : f32 to vector<1x64xf32>
    %68 = arith.mulf %67, %66 : vector<1x64xf32>
    %cst_20 = arith.constant 1.000000e+00 : f32
    %69 = vector.broadcast %cst_20 : f32 to vector<1x64xf32>
    %70 = arith.subf %68, %69 : vector<1x64xf32>
    %71 = vector.extract_strided_slice %63 {offsets = [0, 192], sizes = [1, 64], strides = [1, 1]} : vector<1x256xf32> to vector<1x64xf32>
    %72 = arith.mulf %65, %51 : vector<1x64xf32>
    %73 = arith.mulf %64, %70 : vector<1x64xf32>
    %74 = arith.addf %72, %73 : vector<1x64xf32>
    %75 = math.tanh %74 : vector<1x64xf32>
    %76 = arith.mulf %71, %75 : vector<1x64xf32>
    %77 = vector.extract_strided_slice %28 {offsets = [2, 0], sizes = [1, 256], strides = [1, 1]} : vector<8x256xf32> to vector<1x256xf32>
    %78 = vector.extract_strided_slice %28 {offsets = [5, 0], sizes = [1, 256], strides = [1, 1]} : vector<8x256xf32> to vector<1x256xf32>
    %79 = arith.select %18, %77, %78 : vector<1x256xi1>, vector<1x256xf32>
    %cst_21 = arith.constant dense<0.000000e+00> : vector<1x256xf32>
    %80 = tpu.matmul %76, %24, %cst_21 {dimension_numbers = #tpu.dot_dimension_numbers<[1], [0], [0], [1], [0, 0, 1, 1], [], []>} : vector<1x64xf32>, vector<64x256xf32>, vector<1x256xf32> -> vector<1x256xf32>
    %81 = arith.addf %79, %80 : vector<1x256xf32>
    %82 = arith.negf %81 : vector<1x256xf32>
    %83 = math.exp %82 : vector<1x256xf32>
    %cst_22 = arith.constant 1.000000e+00 : f32
    %84 = vector.broadcast %cst_22 : f32 to vector<1x256xf32>
    %85 = arith.addf %84, %83 : vector<1x256xf32>
    %86 = arith.divf %84, %85 : vector<1x256xf32>
    %87 = vector.extract_strided_slice %86 {offsets = [0, 0], sizes = [1, 64], strides = [1, 1]} : vector<1x256xf32> to vector<1x64xf32>
    %88 = vector.extract_strided_slice %86 {offsets = [0, 64], sizes = [1, 64], strides = [1, 1]} : vector<1x256xf32> to vector<1x64xf32>
    %89 = vector.extract_strided_slice %86 {offsets = [0, 128], sizes = [1, 64], strides = [1, 1]} : vector<1x256xf32> to vector<1x64xf32>
    %cst_23 = arith.constant 2.000000e+00 : f32
    %90 = vector.broadcast %cst_23 : f32 to vector<1x64xf32>
    %91 = arith.mulf %90, %89 : vector<1x64xf32>
    %cst_24 = arith.constant 1.000000e+00 : f32
    %92 = vector.broadcast %cst_24 : f32 to vector<1x64xf32>
    %93 = arith.subf %91, %92 : vector<1x64xf32>
    %94 = vector.extract_strided_slice %86 {offsets = [0, 192], sizes = [1, 64], strides = [1, 1]} : vector<1x256xf32> to vector<1x64xf32>
    %95 = arith.mulf %88, %74 : vector<1x64xf32>
    %96 = arith.mulf %87, %93 : vector<1x64xf32>
    %97 = arith.addf %95, %96 : vector<1x64xf32>
    %98 = math.tanh %97 : vector<1x64xf32>
    %99 = arith.mulf %94, %98 : vector<1x64xf32>
    %100 = vector.extract_strided_slice %28 {offsets = [3, 0], sizes = [1, 256], strides = [1, 1]} : vector<8x256xf32> to vector<1x256xf32>
    %101 = vector.extract_strided_slice %28 {offsets = [4, 0], sizes = [1, 256], strides = [1, 1]} : vector<8x256xf32> to vector<1x256xf32>
    %102 = arith.select %18, %100, %101 : vector<1x256xi1>, vector<1x256xf32>
    %cst_25 = arith.constant dense<0.000000e+00> : vector<1x256xf32>
    %103 = tpu.matmul %99, %24, %cst_25 {dimension_numbers = #tpu.dot_dimension_numbers<[1], [0], [0], [1], [0, 0, 1, 1], [], []>} : vector<1x64xf32>, vector<64x256xf32>, vector<1x256xf32> -> vector<1x256xf32>
    %104 = arith.addf %102, %103 : vector<1x256xf32>
    %105 = arith.negf %104 : vector<1x256xf32>
    %106 = math.exp %105 : vector<1x256xf32>
    %cst_26 = arith.constant 1.000000e+00 : f32
    %107 = vector.broadcast %cst_26 : f32 to vector<1x256xf32>
    %108 = arith.addf %107, %106 : vector<1x256xf32>
    %109 = arith.divf %107, %108 : vector<1x256xf32>
    %110 = vector.extract_strided_slice %109 {offsets = [0, 0], sizes = [1, 64], strides = [1, 1]} : vector<1x256xf32> to vector<1x64xf32>
    %111 = vector.extract_strided_slice %109 {offsets = [0, 64], sizes = [1, 64], strides = [1, 1]} : vector<1x256xf32> to vector<1x64xf32>
    %112 = vector.extract_strided_slice %109 {offsets = [0, 128], sizes = [1, 64], strides = [1, 1]} : vector<1x256xf32> to vector<1x64xf32>
    %cst_27 = arith.constant 2.000000e+00 : f32
    %113 = vector.broadcast %cst_27 : f32 to vector<1x64xf32>
    %114 = arith.mulf %113, %112 : vector<1x64xf32>
    %cst_28 = arith.constant 1.000000e+00 : f32
    %115 = vector.broadcast %cst_28 : f32 to vector<1x64xf32>
    %116 = arith.subf %114, %115 : vector<1x64xf32>
    %117 = vector.extract_strided_slice %109 {offsets = [0, 192], sizes = [1, 64], strides = [1, 1]} : vector<1x256xf32> to vector<1x64xf32>
    %118 = arith.mulf %111, %97 : vector<1x64xf32>
    %119 = arith.mulf %110, %116 : vector<1x64xf32>
    %120 = arith.addf %118, %119 : vector<1x64xf32>
    %121 = math.tanh %120 : vector<1x64xf32>
    %122 = arith.mulf %117, %121 : vector<1x64xf32>
    %123 = vector.extract_strided_slice %28 {offsets = [4, 0], sizes = [1, 256], strides = [1, 1]} : vector<8x256xf32> to vector<1x256xf32>
    %124 = vector.extract_strided_slice %28 {offsets = [3, 0], sizes = [1, 256], strides = [1, 1]} : vector<8x256xf32> to vector<1x256xf32>
    %125 = arith.select %18, %123, %124 : vector<1x256xi1>, vector<1x256xf32>
    %cst_29 = arith.constant dense<0.000000e+00> : vector<1x256xf32>
    %126 = tpu.matmul %122, %24, %cst_29 {dimension_numbers = #tpu.dot_dimension_numbers<[1], [0], [0], [1], [0, 0, 1, 1], [], []>} : vector<1x64xf32>, vector<64x256xf32>, vector<1x256xf32> -> vector<1x256xf32>
    %127 = arith.addf %125, %126 : vector<1x256xf32>
    %128 = arith.negf %127 : vector<1x256xf32>
    %129 = math.exp %128 : vector<1x256xf32>
    %cst_30 = arith.constant 1.000000e+00 : f32
    %130 = vector.broadcast %cst_30 : f32 to vector<1x256xf32>
    %131 = arith.addf %130, %129 : vector<1x256xf32>
    %132 = arith.divf %130, %131 : vector<1x256xf32>
    %133 = vector.extract_strided_slice %132 {offsets = [0, 0], sizes = [1, 64], strides = [1, 1]} : vector<1x256xf32> to vector<1x64xf32>
    %134 = vector.extract_strided_slice %132 {offsets = [0, 64], sizes = [1, 64], strides = [1, 1]} : vector<1x256xf32> to vector<1x64xf32>
    %135 = vector.extract_strided_slice %132 {offsets = [0, 128], sizes = [1, 64], strides = [1, 1]} : vector<1x256xf32> to vector<1x64xf32>
    %cst_31 = arith.constant 2.000000e+00 : f32
    %136 = vector.broadcast %cst_31 : f32 to vector<1x64xf32>
    %137 = arith.mulf %136, %135 : vector<1x64xf32>
    %cst_32 = arith.constant 1.000000e+00 : f32
    %138 = vector.broadcast %cst_32 : f32 to vector<1x64xf32>
    %139 = arith.subf %137, %138 : vector<1x64xf32>
    %140 = vector.extract_strided_slice %132 {offsets = [0, 192], sizes = [1, 64], strides = [1, 1]} : vector<1x256xf32> to vector<1x64xf32>
    %141 = arith.mulf %134, %120 : vector<1x64xf32>
    %142 = arith.mulf %133, %139 : vector<1x64xf32>
    %143 = arith.addf %141, %142 : vector<1x64xf32>
    %144 = math.tanh %143 : vector<1x64xf32>
    %145 = arith.mulf %140, %144 : vector<1x64xf32>
    %146 = vector.extract_strided_slice %28 {offsets = [5, 0], sizes = [1, 256], strides = [1, 1]} : vector<8x256xf32> to vector<1x256xf32>
    %147 = vector.extract_strided_slice %28 {offsets = [2, 0], sizes = [1, 256], strides = [1, 1]} : vector<8x256xf32> to vector<1x256xf32>
    %148 = arith.select %18, %146, %147 : vector<1x256xi1>, vector<1x256xf32>
    %cst_33 = arith.constant dense<0.000000e+00> : vector<1x256xf32>
    %149 = tpu.matmul %145, %24, %cst_33 {dimension_numbers = #tpu.dot_dimension_numbers<[1], [0], [0], [1], [0, 0, 1, 1], [], []>} : vector<1x64xf32>, vector<64x256xf32>, vector<1x256xf32> -> vector<1x256xf32>
    %150 = arith.addf %148, %149 : vector<1x256xf32>
    %151 = arith.negf %150 : vector<1x256xf32>
    %152 = math.exp %151 : vector<1x256xf32>
    %cst_34 = arith.constant 1.000000e+00 : f32
    %153 = vector.broadcast %cst_34 : f32 to vector<1x256xf32>
    %154 = arith.addf %153, %152 : vector<1x256xf32>
    %155 = arith.divf %153, %154 : vector<1x256xf32>
    %156 = vector.extract_strided_slice %155 {offsets = [0, 0], sizes = [1, 64], strides = [1, 1]} : vector<1x256xf32> to vector<1x64xf32>
    %157 = vector.extract_strided_slice %155 {offsets = [0, 64], sizes = [1, 64], strides = [1, 1]} : vector<1x256xf32> to vector<1x64xf32>
    %158 = vector.extract_strided_slice %155 {offsets = [0, 128], sizes = [1, 64], strides = [1, 1]} : vector<1x256xf32> to vector<1x64xf32>
    %cst_35 = arith.constant 2.000000e+00 : f32
    %159 = vector.broadcast %cst_35 : f32 to vector<1x64xf32>
    %160 = arith.mulf %159, %158 : vector<1x64xf32>
    %cst_36 = arith.constant 1.000000e+00 : f32
    %161 = vector.broadcast %cst_36 : f32 to vector<1x64xf32>
    %162 = arith.subf %160, %161 : vector<1x64xf32>
    %163 = vector.extract_strided_slice %155 {offsets = [0, 192], sizes = [1, 64], strides = [1, 1]} : vector<1x256xf32> to vector<1x64xf32>
    %164 = arith.mulf %157, %143 : vector<1x64xf32>
    %165 = arith.mulf %156, %162 : vector<1x64xf32>
    %166 = arith.addf %164, %165 : vector<1x64xf32>
    %167 = math.tanh %166 : vector<1x64xf32>
    %168 = arith.mulf %163, %167 : vector<1x64xf32>
    %169 = vector.extract_strided_slice %28 {offsets = [6, 0], sizes = [1, 256], strides = [1, 1]} : vector<8x256xf32> to vector<1x256xf32>
    %170 = vector.extract_strided_slice %28 {offsets = [1, 0], sizes = [1, 256], strides = [1, 1]} : vector<8x256xf32> to vector<1x256xf32>
    %171 = arith.select %18, %169, %170 : vector<1x256xi1>, vector<1x256xf32>
    %cst_37 = arith.constant dense<0.000000e+00> : vector<1x256xf32>
    %172 = tpu.matmul %168, %24, %cst_37 {dimension_numbers = #tpu.dot_dimension_numbers<[1], [0], [0], [1], [0, 0, 1, 1], [], []>} : vector<1x64xf32>, vector<64x256xf32>, vector<1x256xf32> -> vector<1x256xf32>
    %173 = arith.addf %171, %172 : vector<1x256xf32>
    %174 = arith.negf %173 : vector<1x256xf32>
    %175 = math.exp %174 : vector<1x256xf32>
    %cst_38 = arith.constant 1.000000e+00 : f32
    %176 = vector.broadcast %cst_38 : f32 to vector<1x256xf32>
    %177 = arith.addf %176, %175 : vector<1x256xf32>
    %178 = arith.divf %176, %177 : vector<1x256xf32>
    %179 = vector.extract_strided_slice %178 {offsets = [0, 0], sizes = [1, 64], strides = [1, 1]} : vector<1x256xf32> to vector<1x64xf32>
    %180 = vector.extract_strided_slice %178 {offsets = [0, 64], sizes = [1, 64], strides = [1, 1]} : vector<1x256xf32> to vector<1x64xf32>
    %181 = vector.extract_strided_slice %178 {offsets = [0, 128], sizes = [1, 64], strides = [1, 1]} : vector<1x256xf32> to vector<1x64xf32>
    %cst_39 = arith.constant 2.000000e+00 : f32
    %182 = vector.broadcast %cst_39 : f32 to vector<1x64xf32>
    %183 = arith.mulf %182, %181 : vector<1x64xf32>
    %cst_40 = arith.constant 1.000000e+00 : f32
    %184 = vector.broadcast %cst_40 : f32 to vector<1x64xf32>
    %185 = arith.subf %183, %184 : vector<1x64xf32>
    %186 = vector.extract_strided_slice %178 {offsets = [0, 192], sizes = [1, 64], strides = [1, 1]} : vector<1x256xf32> to vector<1x64xf32>
    %187 = arith.mulf %180, %166 : vector<1x64xf32>
    %188 = arith.mulf %179, %185 : vector<1x64xf32>
    %189 = arith.addf %187, %188 : vector<1x64xf32>
    %190 = math.tanh %189 : vector<1x64xf32>
    %191 = arith.mulf %186, %190 : vector<1x64xf32>
    %192 = vector.extract_strided_slice %28 {offsets = [7, 0], sizes = [1, 256], strides = [1, 1]} : vector<8x256xf32> to vector<1x256xf32>
    %193 = vector.extract_strided_slice %28 {offsets = [0, 0], sizes = [1, 256], strides = [1, 1]} : vector<8x256xf32> to vector<1x256xf32>
    %194 = arith.select %18, %192, %193 : vector<1x256xi1>, vector<1x256xf32>
    %cst_41 = arith.constant dense<0.000000e+00> : vector<1x256xf32>
    %195 = tpu.matmul %191, %24, %cst_41 {dimension_numbers = #tpu.dot_dimension_numbers<[1], [0], [0], [1], [0, 0, 1, 1], [], []>} : vector<1x64xf32>, vector<64x256xf32>, vector<1x256xf32> -> vector<1x256xf32>
    %196 = arith.addf %194, %195 : vector<1x256xf32>
    %197 = arith.negf %196 : vector<1x256xf32>
    %198 = math.exp %197 : vector<1x256xf32>
    %cst_42 = arith.constant 1.000000e+00 : f32
    %199 = vector.broadcast %cst_42 : f32 to vector<1x256xf32>
    %200 = arith.addf %199, %198 : vector<1x256xf32>
    %201 = arith.divf %199, %200 : vector<1x256xf32>
    %202 = vector.extract_strided_slice %201 {offsets = [0, 0], sizes = [1, 64], strides = [1, 1]} : vector<1x256xf32> to vector<1x64xf32>
    %203 = vector.extract_strided_slice %201 {offsets = [0, 64], sizes = [1, 64], strides = [1, 1]} : vector<1x256xf32> to vector<1x64xf32>
    %204 = vector.extract_strided_slice %201 {offsets = [0, 128], sizes = [1, 64], strides = [1, 1]} : vector<1x256xf32> to vector<1x64xf32>
    %cst_43 = arith.constant 2.000000e+00 : f32
    %205 = vector.broadcast %cst_43 : f32 to vector<1x64xf32>
    %206 = arith.mulf %205, %204 : vector<1x64xf32>
    %cst_44 = arith.constant 1.000000e+00 : f32
    %207 = vector.broadcast %cst_44 : f32 to vector<1x64xf32>
    %208 = arith.subf %206, %207 : vector<1x64xf32>
    %209 = vector.extract_strided_slice %201 {offsets = [0, 192], sizes = [1, 64], strides = [1, 1]} : vector<1x256xf32> to vector<1x64xf32>
    %210 = arith.mulf %203, %189 : vector<1x64xf32>
    %211 = arith.mulf %202, %208 : vector<1x64xf32>
    %212 = arith.addf %210, %211 : vector<1x64xf32>
    %213 = math.tanh %212 : vector<1x64xf32>
    %214 = arith.mulf %209, %213 : vector<1x64xf32>
    %215 = arith.select %21, %53, %214 : vector<1x64xi1>, vector<1x64xf32>
    %c0_45 = arith.constant 0 : index
    %c0_46 = arith.constant 0 : index
    %216 = vector.load %arg7[%c0_45, %c0_46] : memref<8x64xf32, #tpu.memory_space<vmem>>, vector<1x64xf32>
    tpu.vector_store %arg7[%c0_45, %c0_46], %215 {strides = array<i32>} : memref<8x64xf32, #tpu.memory_space<vmem>>, vector<1x64xf32>,
    %217 = arith.select %21, %76, %191 : vector<1x64xi1>, vector<1x64xf32>
    %c1 = arith.constant 1 : index
    %c0_47 = arith.constant 0 : index
    %218 = vector.load %arg7[%c1, %c0_47] : memref<8x64xf32, #tpu.memory_space<vmem>>, vector<1x64xf32>
    tpu.vector_store %arg7[%c1, %c0_47], %217 {strides = array<i32>} : memref<8x64xf32, #tpu.memory_space<vmem>>, vector<1x64xf32>,
    %219 = arith.select %21, %99, %168 : vector<1x64xi1>, vector<1x64xf32>
    %c2 = arith.constant 2 : index
    %c0_48 = arith.constant 0 : index
    %220 = vector.load %arg7[%c2, %c0_48] : memref<8x64xf32, #tpu.memory_space<vmem>>, vector<1x64xf32>
    tpu.vector_store %arg7[%c2, %c0_48], %219 {strides = array<i32>} : memref<8x64xf32, #tpu.memory_space<vmem>>, vector<1x64xf32>,
    %221 = arith.select %21, %122, %145 : vector<1x64xi1>, vector<1x64xf32>
    %c3 = arith.constant 3 : index
    %c0_49 = arith.constant 0 : index
    %222 = vector.load %arg7[%c3, %c0_49] : memref<8x64xf32, #tpu.memory_space<vmem>>, vector<1x64xf32>
    tpu.vector_store %arg7[%c3, %c0_49], %221 {strides = array<i32>} : memref<8x64xf32, #tpu.memory_space<vmem>>, vector<1x64xf32>,
    %223 = arith.select %21, %145, %122 : vector<1x64xi1>, vector<1x64xf32>
    %c4 = arith.constant 4 : index
    %c0_50 = arith.constant 0 : index
    %224 = vector.load %arg7[%c4, %c0_50] : memref<8x64xf32, #tpu.memory_space<vmem>>, vector<1x64xf32>
    tpu.vector_store %arg7[%c4, %c0_50], %223 {strides = array<i32>} : memref<8x64xf32, #tpu.memory_space<vmem>>, vector<1x64xf32>,
    %225 = arith.select %21, %168, %99 : vector<1x64xi1>, vector<1x64xf32>
    %c5 = arith.constant 5 : index
    %c0_51 = arith.constant 0 : index
    %226 = vector.load %arg7[%c5, %c0_51] : memref<8x64xf32, #tpu.memory_space<vmem>>, vector<1x64xf32>
    tpu.vector_store %arg7[%c5, %c0_51], %225 {strides = array<i32>} : memref<8x64xf32, #tpu.memory_space<vmem>>, vector<1x64xf32>,
    %227 = arith.select %21, %191, %76 : vector<1x64xi1>, vector<1x64xf32>
    %c6 = arith.constant 6 : index
    %c0_52 = arith.constant 0 : index
    %228 = vector.load %arg7[%c6, %c0_52] : memref<8x64xf32, #tpu.memory_space<vmem>>, vector<1x64xf32>
    tpu.vector_store %arg7[%c6, %c0_52], %227 {strides = array<i32>} : memref<8x64xf32, #tpu.memory_space<vmem>>, vector<1x64xf32>,
    %229 = arith.select %21, %214, %53 : vector<1x64xi1>, vector<1x64xf32>
    %c7 = arith.constant 7 : index
    %c0_53 = arith.constant 0 : index
    %230 = vector.load %arg7[%c7, %c0_53] : memref<8x64xf32, #tpu.memory_space<vmem>>, vector<1x64xf32>
    tpu.vector_store %arg7[%c7, %c0_53], %229 {strides = array<i32>} : memref<8x64xf32, #tpu.memory_space<vmem>>, vector<1x64xf32>,
    %c0_54 = arith.constant 0 : index
    %c0_55 = arith.constant 0 : index
    %231 = vector.load %arg7[%c0_54, %c0_55] : memref<8x64xf32, #tpu.memory_space<vmem>>, vector<8x64xf32>
    %c0_56 = arith.constant 0 : index
    %c0_57 = arith.constant 0 : index
    %232 = vector.load %arg4[%c0_56, %c0_57] : memref<64x256xf32, #tpu.memory_space<vmem>>, vector<64x256xf32>
    %c0_58 = arith.constant 0 : index
    %c0_59 = arith.constant 0 : index
    %233 = vector.load %arg5[%c0_58, %c0_59] : memref<64x256xf32, #tpu.memory_space<vmem>>, vector<64x256xf32>
    %c0_60 = arith.constant 0 : index
    %c0_61 = arith.constant 0 : index
    %234 = vector.load %arg6[%c0_60, %c0_61] : memref<1x256xf32, #tpu.memory_space<vmem>>, vector<1x256xf32>
    %cst_62 = arith.constant dense<0.000000e+00> : vector<8x256xf32>
    %235 = tpu.matmul %231, %232, %cst_62 {dimension_numbers = #tpu.dot_dimension_numbers<[1], [0], [0], [1], [0, 0, 1, 1], [], []>} : vector<8x64xf32>, vector<64x256xf32>, vector<8x256xf32> -> vector<8x256xf32>
    %236 = vector.broadcast %234 : vector<1x256xf32> to vector<8x256xf32>
    %237 = arith.addf %235, %236 : vector<8x256xf32>
    %cst_63 = arith.constant 0.000000e+00 : f32
    %238 = vector.broadcast %cst_63 : f32 to vector<1x64xf32>
    %cst_64 = arith.constant 0.000000e+00 : f32
    %239 = vector.broadcast %cst_64 : f32 to vector<1x64xf32>
    %240 = vector.extract_strided_slice %237 {offsets = [0, 0], sizes = [1, 256], strides = [1, 1]} : vector<8x256xf32> to vector<1x256xf32>
    %241 = vector.extract_strided_slice %237 {offsets = [7, 0], sizes = [1, 256], strides = [1, 1]} : vector<8x256xf32> to vector<1x256xf32>
    %242 = arith.select %18, %240, %241 : vector<1x256xi1>, vector<1x256xf32>
    %cst_65 = arith.constant dense<0.000000e+00> : vector<1x256xf32>
    %243 = tpu.matmul %238, %233, %cst_65 {dimension_numbers = #tpu.dot_dimension_numbers<[1], [0], [0], [1], [0, 0, 1, 1], [], []>} : vector<1x64xf32>, vector<64x256xf32>, vector<1x256xf32> -> vector<1x256xf32>
    %244 = arith.addf %242, %243 : vector<1x256xf32>
    %245 = arith.negf %244 : vector<1x256xf32>
    %246 = math.exp %245 : vector<1x256xf32>
    %cst_66 = arith.constant 1.000000e+00 : f32
    %247 = vector.broadcast %cst_66 : f32 to vector<1x256xf32>
    %248 = arith.addf %247, %246 : vector<1x256xf32>
    %249 = arith.divf %247, %248 : vector<1x256xf32>
    %250 = vector.extract_strided_slice %249 {offsets = [0, 0], sizes = [1, 64], strides = [1, 1]} : vector<1x256xf32> to vector<1x64xf32>
    %251 = vector.extract_strided_slice %249 {offsets = [0, 64], sizes = [1, 64], strides = [1, 1]} : vector<1x256xf32> to vector<1x64xf32>
    %252 = vector.extract_strided_slice %249 {offsets = [0, 128], sizes = [1, 64], strides = [1, 1]} : vector<1x256xf32> to vector<1x64xf32>
    %cst_67 = arith.constant 2.000000e+00 : f32
    %253 = vector.broadcast %cst_67 : f32 to vector<1x64xf32>
    %254 = arith.mulf %253, %252 : vector<1x64xf32>
    %cst_68 = arith.constant 1.000000e+00 : f32
    %255 = vector.broadcast %cst_68 : f32 to vector<1x64xf32>
    %256 = arith.subf %254, %255 : vector<1x64xf32>
    %257 = vector.extract_strided_slice %249 {offsets = [0, 192], sizes = [1, 64], strides = [1, 1]} : vector<1x256xf32> to vector<1x64xf32>
    %258 = arith.mulf %251, %239 : vector<1x64xf32>
    %259 = arith.mulf %250, %256 : vector<1x64xf32>
    %260 = arith.addf %258, %259 : vector<1x64xf32>
    %261 = math.tanh %260 : vector<1x64xf32>
    %262 = arith.mulf %257, %261 : vector<1x64xf32>
    %263 = vector.extract_strided_slice %237 {offsets = [1, 0], sizes = [1, 256], strides = [1, 1]} : vector<8x256xf32> to vector<1x256xf32>
    %264 = vector.extract_strided_slice %237 {offsets = [6, 0], sizes = [1, 256], strides = [1, 1]} : vector<8x256xf32> to vector<1x256xf32>
    %265 = arith.select %18, %263, %264 : vector<1x256xi1>, vector<1x256xf32>
    %cst_69 = arith.constant dense<0.000000e+00> : vector<1x256xf32>
    %266 = tpu.matmul %262, %233, %cst_69 {dimension_numbers = #tpu.dot_dimension_numbers<[1], [0], [0], [1], [0, 0, 1, 1], [], []>} : vector<1x64xf32>, vector<64x256xf32>, vector<1x256xf32> -> vector<1x256xf32>
    %267 = arith.addf %265, %266 : vector<1x256xf32>
    %268 = arith.negf %267 : vector<1x256xf32>
    %269 = math.exp %268 : vector<1x256xf32>
    %cst_70 = arith.constant 1.000000e+00 : f32
    %270 = vector.broadcast %cst_70 : f32 to vector<1x256xf32>
    %271 = arith.addf %270, %269 : vector<1x256xf32>
    %272 = arith.divf %270, %271 : vector<1x256xf32>
    %273 = vector.extract_strided_slice %272 {offsets = [0, 0], sizes = [1, 64], strides = [1, 1]} : vector<1x256xf32> to vector<1x64xf32>
    %274 = vector.extract_strided_slice %272 {offsets = [0, 64], sizes = [1, 64], strides = [1, 1]} : vector<1x256xf32> to vector<1x64xf32>
    %275 = vector.extract_strided_slice %272 {offsets = [0, 128], sizes = [1, 64], strides = [1, 1]} : vector<1x256xf32> to vector<1x64xf32>
    %cst_71 = arith.constant 2.000000e+00 : f32
    %276 = vector.broadcast %cst_71 : f32 to vector<1x64xf32>
    %277 = arith.mulf %276, %275 : vector<1x64xf32>
    %cst_72 = arith.constant 1.000000e+00 : f32
    %278 = vector.broadcast %cst_72 : f32 to vector<1x64xf32>
    %279 = arith.subf %277, %278 : vector<1x64xf32>
    %280 = vector.extract_strided_slice %272 {offsets = [0, 192], sizes = [1, 64], strides = [1, 1]} : vector<1x256xf32> to vector<1x64xf32>
    %281 = arith.mulf %274, %260 : vector<1x64xf32>
    %282 = arith.mulf %273, %279 : vector<1x64xf32>
    %283 = arith.addf %281, %282 : vector<1x64xf32>
    %284 = math.tanh %283 : vector<1x64xf32>
    %285 = arith.mulf %280, %284 : vector<1x64xf32>
    %286 = vector.extract_strided_slice %237 {offsets = [2, 0], sizes = [1, 256], strides = [1, 1]} : vector<8x256xf32> to vector<1x256xf32>
    %287 = vector.extract_strided_slice %237 {offsets = [5, 0], sizes = [1, 256], strides = [1, 1]} : vector<8x256xf32> to vector<1x256xf32>
    %288 = arith.select %18, %286, %287 : vector<1x256xi1>, vector<1x256xf32>
    %cst_73 = arith.constant dense<0.000000e+00> : vector<1x256xf32>
    %289 = tpu.matmul %285, %233, %cst_73 {dimension_numbers = #tpu.dot_dimension_numbers<[1], [0], [0], [1], [0, 0, 1, 1], [], []>} : vector<1x64xf32>, vector<64x256xf32>, vector<1x256xf32> -> vector<1x256xf32>
    %290 = arith.addf %288, %289 : vector<1x256xf32>
    %291 = arith.negf %290 : vector<1x256xf32>
    %292 = math.exp %291 : vector<1x256xf32>
    %cst_74 = arith.constant 1.000000e+00 : f32
    %293 = vector.broadcast %cst_74 : f32 to vector<1x256xf32>
    %294 = arith.addf %293, %292 : vector<1x256xf32>
    %295 = arith.divf %293, %294 : vector<1x256xf32>
    %296 = vector.extract_strided_slice %295 {offsets = [0, 0], sizes = [1, 64], strides = [1, 1]} : vector<1x256xf32> to vector<1x64xf32>
    %297 = vector.extract_strided_slice %295 {offsets = [0, 64], sizes = [1, 64], strides = [1, 1]} : vector<1x256xf32> to vector<1x64xf32>
    %298 = vector.extract_strided_slice %295 {offsets = [0, 128], sizes = [1, 64], strides = [1, 1]} : vector<1x256xf32> to vector<1x64xf32>
    %cst_75 = arith.constant 2.000000e+00 : f32
    %299 = vector.broadcast %cst_75 : f32 to vector<1x64xf32>
    %300 = arith.mulf %299, %298 : vector<1x64xf32>
    %cst_76 = arith.constant 1.000000e+00 : f32
    %301 = vector.broadcast %cst_76 : f32 to vector<1x64xf32>
    %302 = arith.subf %300, %301 : vector<1x64xf32>
    %303 = vector.extract_strided_slice %295 {offsets = [0, 192], sizes = [1, 64], strides = [1, 1]} : vector<1x256xf32> to vector<1x64xf32>
    %304 = arith.mulf %297, %283 : vector<1x64xf32>
    %305 = arith.mulf %296, %302 : vector<1x64xf32>
    %306 = arith.addf %304, %305 : vector<1x64xf32>
    %307 = math.tanh %306 : vector<1x64xf32>
    %308 = arith.mulf %303, %307 : vector<1x64xf32>
    %309 = vector.extract_strided_slice %237 {offsets = [3, 0], sizes = [1, 256], strides = [1, 1]} : vector<8x256xf32> to vector<1x256xf32>
    %310 = vector.extract_strided_slice %237 {offsets = [4, 0], sizes = [1, 256], strides = [1, 1]} : vector<8x256xf32> to vector<1x256xf32>
    %311 = arith.select %18, %309, %310 : vector<1x256xi1>, vector<1x256xf32>
    %cst_77 = arith.constant dense<0.000000e+00> : vector<1x256xf32>
    %312 = tpu.matmul %308, %233, %cst_77 {dimension_numbers = #tpu.dot_dimension_numbers<[1], [0], [0], [1], [0, 0, 1, 1], [], []>} : vector<1x64xf32>, vector<64x256xf32>, vector<1x256xf32> -> vector<1x256xf32>
    %313 = arith.addf %311, %312 : vector<1x256xf32>
    %314 = arith.negf %313 : vector<1x256xf32>
    %315 = math.exp %314 : vector<1x256xf32>
    %cst_78 = arith.constant 1.000000e+00 : f32
    %316 = vector.broadcast %cst_78 : f32 to vector<1x256xf32>
    %317 = arith.addf %316, %315 : vector<1x256xf32>
    %318 = arith.divf %316, %317 : vector<1x256xf32>
    %319 = vector.extract_strided_slice %318 {offsets = [0, 0], sizes = [1, 64], strides = [1, 1]} : vector<1x256xf32> to vector<1x64xf32>
    %320 = vector.extract_strided_slice %318 {offsets = [0, 64], sizes = [1, 64], strides = [1, 1]} : vector<1x256xf32> to vector<1x64xf32>
    %321 = vector.extract_strided_slice %318 {offsets = [0, 128], sizes = [1, 64], strides = [1, 1]} : vector<1x256xf32> to vector<1x64xf32>
    %cst_79 = arith.constant 2.000000e+00 : f32
    %322 = vector.broadcast %cst_79 : f32 to vector<1x64xf32>
    %323 = arith.mulf %322, %321 : vector<1x64xf32>
    %cst_80 = arith.constant 1.000000e+00 : f32
    %324 = vector.broadcast %cst_80 : f32 to vector<1x64xf32>
    %325 = arith.subf %323, %324 : vector<1x64xf32>
    %326 = vector.extract_strided_slice %318 {offsets = [0, 192], sizes = [1, 64], strides = [1, 1]} : vector<1x256xf32> to vector<1x64xf32>
    %327 = arith.mulf %320, %306 : vector<1x64xf32>
    %328 = arith.mulf %319, %325 : vector<1x64xf32>
    %329 = arith.addf %327, %328 : vector<1x64xf32>
    %330 = math.tanh %329 : vector<1x64xf32>
    %331 = arith.mulf %326, %330 : vector<1x64xf32>
    %332 = vector.extract_strided_slice %237 {offsets = [4, 0], sizes = [1, 256], strides = [1, 1]} : vector<8x256xf32> to vector<1x256xf32>
    %333 = vector.extract_strided_slice %237 {offsets = [3, 0], sizes = [1, 256], strides = [1, 1]} : vector<8x256xf32> to vector<1x256xf32>
    %334 = arith.select %18, %332, %333 : vector<1x256xi1>, vector<1x256xf32>
    %cst_81 = arith.constant dense<0.000000e+00> : vector<1x256xf32>
    %335 = tpu.matmul %331, %233, %cst_81 {dimension_numbers = #tpu.dot_dimension_numbers<[1], [0], [0], [1], [0, 0, 1, 1], [], []>} : vector<1x64xf32>, vector<64x256xf32>, vector<1x256xf32> -> vector<1x256xf32>
    %336 = arith.addf %334, %335 : vector<1x256xf32>
    %337 = arith.negf %336 : vector<1x256xf32>
    %338 = math.exp %337 : vector<1x256xf32>
    %cst_82 = arith.constant 1.000000e+00 : f32
    %339 = vector.broadcast %cst_82 : f32 to vector<1x256xf32>
    %340 = arith.addf %339, %338 : vector<1x256xf32>
    %341 = arith.divf %339, %340 : vector<1x256xf32>
    %342 = vector.extract_strided_slice %341 {offsets = [0, 0], sizes = [1, 64], strides = [1, 1]} : vector<1x256xf32> to vector<1x64xf32>
    %343 = vector.extract_strided_slice %341 {offsets = [0, 64], sizes = [1, 64], strides = [1, 1]} : vector<1x256xf32> to vector<1x64xf32>
    %344 = vector.extract_strided_slice %341 {offsets = [0, 128], sizes = [1, 64], strides = [1, 1]} : vector<1x256xf32> to vector<1x64xf32>
    %cst_83 = arith.constant 2.000000e+00 : f32
    %345 = vector.broadcast %cst_83 : f32 to vector<1x64xf32>
    %346 = arith.mulf %345, %344 : vector<1x64xf32>
    %cst_84 = arith.constant 1.000000e+00 : f32
    %347 = vector.broadcast %cst_84 : f32 to vector<1x64xf32>
    %348 = arith.subf %346, %347 : vector<1x64xf32>
    %349 = vector.extract_strided_slice %341 {offsets = [0, 192], sizes = [1, 64], strides = [1, 1]} : vector<1x256xf32> to vector<1x64xf32>
    %350 = arith.mulf %343, %329 : vector<1x64xf32>
    %351 = arith.mulf %342, %348 : vector<1x64xf32>
    %352 = arith.addf %350, %351 : vector<1x64xf32>
    %353 = math.tanh %352 : vector<1x64xf32>
    %354 = arith.mulf %349, %353 : vector<1x64xf32>
    %355 = vector.extract_strided_slice %237 {offsets = [5, 0], sizes = [1, 256], strides = [1, 1]} : vector<8x256xf32> to vector<1x256xf32>
    %356 = vector.extract_strided_slice %237 {offsets = [2, 0], sizes = [1, 256], strides = [1, 1]} : vector<8x256xf32> to vector<1x256xf32>
    %357 = arith.select %18, %355, %356 : vector<1x256xi1>, vector<1x256xf32>
    %cst_85 = arith.constant dense<0.000000e+00> : vector<1x256xf32>
    %358 = tpu.matmul %354, %233, %cst_85 {dimension_numbers = #tpu.dot_dimension_numbers<[1], [0], [0], [1], [0, 0, 1, 1], [], []>} : vector<1x64xf32>, vector<64x256xf32>, vector<1x256xf32> -> vector<1x256xf32>
    %359 = arith.addf %357, %358 : vector<1x256xf32>
    %360 = arith.negf %359 : vector<1x256xf32>
    %361 = math.exp %360 : vector<1x256xf32>
    %cst_86 = arith.constant 1.000000e+00 : f32
    %362 = vector.broadcast %cst_86 : f32 to vector<1x256xf32>
    %363 = arith.addf %362, %361 : vector<1x256xf32>
    %364 = arith.divf %362, %363 : vector<1x256xf32>
    %365 = vector.extract_strided_slice %364 {offsets = [0, 0], sizes = [1, 64], strides = [1, 1]} : vector<1x256xf32> to vector<1x64xf32>
    %366 = vector.extract_strided_slice %364 {offsets = [0, 64], sizes = [1, 64], strides = [1, 1]} : vector<1x256xf32> to vector<1x64xf32>
    %367 = vector.extract_strided_slice %364 {offsets = [0, 128], sizes = [1, 64], strides = [1, 1]} : vector<1x256xf32> to vector<1x64xf32>
    %cst_87 = arith.constant 2.000000e+00 : f32
    %368 = vector.broadcast %cst_87 : f32 to vector<1x64xf32>
    %369 = arith.mulf %368, %367 : vector<1x64xf32>
    %cst_88 = arith.constant 1.000000e+00 : f32
    %370 = vector.broadcast %cst_88 : f32 to vector<1x64xf32>
    %371 = arith.subf %369, %370 : vector<1x64xf32>
    %372 = vector.extract_strided_slice %364 {offsets = [0, 192], sizes = [1, 64], strides = [1, 1]} : vector<1x256xf32> to vector<1x64xf32>
    %373 = arith.mulf %366, %352 : vector<1x64xf32>
    %374 = arith.mulf %365, %371 : vector<1x64xf32>
    %375 = arith.addf %373, %374 : vector<1x64xf32>
    %376 = math.tanh %375 : vector<1x64xf32>
    %377 = arith.mulf %372, %376 : vector<1x64xf32>
    %378 = vector.extract_strided_slice %237 {offsets = [6, 0], sizes = [1, 256], strides = [1, 1]} : vector<8x256xf32> to vector<1x256xf32>
    %379 = vector.extract_strided_slice %237 {offsets = [1, 0], sizes = [1, 256], strides = [1, 1]} : vector<8x256xf32> to vector<1x256xf32>
    %380 = arith.select %18, %378, %379 : vector<1x256xi1>, vector<1x256xf32>
    %cst_89 = arith.constant dense<0.000000e+00> : vector<1x256xf32>
    %381 = tpu.matmul %377, %233, %cst_89 {dimension_numbers = #tpu.dot_dimension_numbers<[1], [0], [0], [1], [0, 0, 1, 1], [], []>} : vector<1x64xf32>, vector<64x256xf32>, vector<1x256xf32> -> vector<1x256xf32>
    %382 = arith.addf %380, %381 : vector<1x256xf32>
    %383 = arith.negf %382 : vector<1x256xf32>
    %384 = math.exp %383 : vector<1x256xf32>
    %cst_90 = arith.constant 1.000000e+00 : f32
    %385 = vector.broadcast %cst_90 : f32 to vector<1x256xf32>
    %386 = arith.addf %385, %384 : vector<1x256xf32>
    %387 = arith.divf %385, %386 : vector<1x256xf32>
    %388 = vector.extract_strided_slice %387 {offsets = [0, 0], sizes = [1, 64], strides = [1, 1]} : vector<1x256xf32> to vector<1x64xf32>
    %389 = vector.extract_strided_slice %387 {offsets = [0, 64], sizes = [1, 64], strides = [1, 1]} : vector<1x256xf32> to vector<1x64xf32>
    %390 = vector.extract_strided_slice %387 {offsets = [0, 128], sizes = [1, 64], strides = [1, 1]} : vector<1x256xf32> to vector<1x64xf32>
    %cst_91 = arith.constant 2.000000e+00 : f32
    %391 = vector.broadcast %cst_91 : f32 to vector<1x64xf32>
    %392 = arith.mulf %391, %390 : vector<1x64xf32>
    %cst_92 = arith.constant 1.000000e+00 : f32
    %393 = vector.broadcast %cst_92 : f32 to vector<1x64xf32>
    %394 = arith.subf %392, %393 : vector<1x64xf32>
    %395 = vector.extract_strided_slice %387 {offsets = [0, 192], sizes = [1, 64], strides = [1, 1]} : vector<1x256xf32> to vector<1x64xf32>
    %396 = arith.mulf %389, %375 : vector<1x64xf32>
    %397 = arith.mulf %388, %394 : vector<1x64xf32>
    %398 = arith.addf %396, %397 : vector<1x64xf32>
    %399 = math.tanh %398 : vector<1x64xf32>
    %400 = arith.mulf %395, %399 : vector<1x64xf32>
    %401 = vector.extract_strided_slice %237 {offsets = [7, 0], sizes = [1, 256], strides = [1, 1]} : vector<8x256xf32> to vector<1x256xf32>
    %402 = vector.extract_strided_slice %237 {offsets = [0, 0], sizes = [1, 256], strides = [1, 1]} : vector<8x256xf32> to vector<1x256xf32>
    %403 = arith.select %18, %401, %402 : vector<1x256xi1>, vector<1x256xf32>
    %cst_93 = arith.constant dense<0.000000e+00> : vector<1x256xf32>
    %404 = tpu.matmul %400, %233, %cst_93 {dimension_numbers = #tpu.dot_dimension_numbers<[1], [0], [0], [1], [0, 0, 1, 1], [], []>} : vector<1x64xf32>, vector<64x256xf32>, vector<1x256xf32> -> vector<1x256xf32>
    %405 = arith.addf %403, %404 : vector<1x256xf32>
    %406 = arith.negf %405 : vector<1x256xf32>
    %407 = math.exp %406 : vector<1x256xf32>
    %cst_94 = arith.constant 1.000000e+00 : f32
    %408 = vector.broadcast %cst_94 : f32 to vector<1x256xf32>
    %409 = arith.addf %408, %407 : vector<1x256xf32>
    %410 = arith.divf %408, %409 : vector<1x256xf32>
    %411 = vector.extract_strided_slice %410 {offsets = [0, 0], sizes = [1, 64], strides = [1, 1]} : vector<1x256xf32> to vector<1x64xf32>
    %412 = vector.extract_strided_slice %410 {offsets = [0, 64], sizes = [1, 64], strides = [1, 1]} : vector<1x256xf32> to vector<1x64xf32>
    %413 = vector.extract_strided_slice %410 {offsets = [0, 128], sizes = [1, 64], strides = [1, 1]} : vector<1x256xf32> to vector<1x64xf32>
    %cst_95 = arith.constant 2.000000e+00 : f32
    %414 = vector.broadcast %cst_95 : f32 to vector<1x64xf32>
    %415 = arith.mulf %414, %413 : vector<1x64xf32>
    %cst_96 = arith.constant 1.000000e+00 : f32
    %416 = vector.broadcast %cst_96 : f32 to vector<1x64xf32>
    %417 = arith.subf %415, %416 : vector<1x64xf32>
    %418 = vector.extract_strided_slice %410 {offsets = [0, 192], sizes = [1, 64], strides = [1, 1]} : vector<1x256xf32> to vector<1x64xf32>
    %419 = arith.mulf %412, %398 : vector<1x64xf32>
    %420 = arith.mulf %411, %417 : vector<1x64xf32>
    %421 = arith.addf %419, %420 : vector<1x64xf32>
    %422 = math.tanh %421 : vector<1x64xf32>
    %423 = arith.mulf %418, %422 : vector<1x64xf32>
    %424 = arith.select %21, %262, %423 : vector<1x64xi1>, vector<1x64xf32>
    %c0_97 = arith.constant 0 : index
    %c0_98 = arith.constant 0 : index
    %425 = vector.load %arg7[%c0_97, %c0_98] : memref<8x64xf32, #tpu.memory_space<vmem>>, vector<1x64xf32>
    tpu.vector_store %arg7[%c0_97, %c0_98], %424 {strides = array<i32>} : memref<8x64xf32, #tpu.memory_space<vmem>>, vector<1x64xf32>,
    %426 = arith.select %21, %285, %400 : vector<1x64xi1>, vector<1x64xf32>
    %c1_99 = arith.constant 1 : index
    %c0_100 = arith.constant 0 : index
    %427 = vector.load %arg7[%c1_99, %c0_100] : memref<8x64xf32, #tpu.memory_space<vmem>>, vector<1x64xf32>
    tpu.vector_store %arg7[%c1_99, %c0_100], %426 {strides = array<i32>} : memref<8x64xf32, #tpu.memory_space<vmem>>, vector<1x64xf32>,
    %428 = arith.select %21, %308, %377 : vector<1x64xi1>, vector<1x64xf32>
    %c2_101 = arith.constant 2 : index
    %c0_102 = arith.constant 0 : index
    %429 = vector.load %arg7[%c2_101, %c0_102] : memref<8x64xf32, #tpu.memory_space<vmem>>, vector<1x64xf32>
    tpu.vector_store %arg7[%c2_101, %c0_102], %428 {strides = array<i32>} : memref<8x64xf32, #tpu.memory_space<vmem>>, vector<1x64xf32>,
    %430 = arith.select %21, %331, %354 : vector<1x64xi1>, vector<1x64xf32>
    %c3_103 = arith.constant 3 : index
    %c0_104 = arith.constant 0 : index
    %431 = vector.load %arg7[%c3_103, %c0_104] : memref<8x64xf32, #tpu.memory_space<vmem>>, vector<1x64xf32>
    tpu.vector_store %arg7[%c3_103, %c0_104], %430 {strides = array<i32>} : memref<8x64xf32, #tpu.memory_space<vmem>>, vector<1x64xf32>,
    %432 = arith.select %21, %354, %331 : vector<1x64xi1>, vector<1x64xf32>
    %c4_105 = arith.constant 4 : index
    %c0_106 = arith.constant 0 : index
    %433 = vector.load %arg7[%c4_105, %c0_106] : memref<8x64xf32, #tpu.memory_space<vmem>>, vector<1x64xf32>
    tpu.vector_store %arg7[%c4_105, %c0_106], %432 {strides = array<i32>} : memref<8x64xf32, #tpu.memory_space<vmem>>, vector<1x64xf32>,
    %434 = arith.select %21, %377, %308 : vector<1x64xi1>, vector<1x64xf32>
    %c5_107 = arith.constant 5 : index
    %c0_108 = arith.constant 0 : index
    %435 = vector.load %arg7[%c5_107, %c0_108] : memref<8x64xf32, #tpu.memory_space<vmem>>, vector<1x64xf32>
    tpu.vector_store %arg7[%c5_107, %c0_108], %434 {strides = array<i32>} : memref<8x64xf32, #tpu.memory_space<vmem>>, vector<1x64xf32>,
    %436 = arith.select %21, %400, %285 : vector<1x64xi1>, vector<1x64xf32>
    %c6_109 = arith.constant 6 : index
    %c0_110 = arith.constant 0 : index
    %437 = vector.load %arg7[%c6_109, %c0_110] : memref<8x64xf32, #tpu.memory_space<vmem>>, vector<1x64xf32>
    tpu.vector_store %arg7[%c6_109, %c0_110], %436 {strides = array<i32>} : memref<8x64xf32, #tpu.memory_space<vmem>>, vector<1x64xf32>,
    %438 = arith.select %21, %423, %262 : vector<1x64xi1>, vector<1x64xf32>
    %c7_111 = arith.constant 7 : index
    %c0_112 = arith.constant 0 : index
    %439 = vector.load %arg7[%c7_111, %c0_112] : memref<8x64xf32, #tpu.memory_space<vmem>>, vector<1x64xf32>
    tpu.vector_store %arg7[%c7_111, %c0_112], %438 {strides = array<i32>} : memref<8x64xf32, #tpu.memory_space<vmem>>, vector<1x64xf32>,
    return
  }
}

</mosaic_0001>

<llo_original>
// kernel: tpu_custom_call.1
$region0: #{tpu_custom_call.1}
  #allocation0 [shape = 'u32[]', space=smem, size = 0x4, offset = 0x4, fixed_abs, tag = 'smem constant byte address 0x4 - core index']
  #allocation1 [shape = 'u32[144,128]{1,0:T(1,128)}', space=vmem, size = 0x12000, scoped, tag = 'internal scratch']
  %s0 = inlined_call_operand.hbm [shape: f32[8,16], index: 0, kind: input, shape index: {}]
  %s1 = inlined_call_operand.hbm [shape: f32[16,256], index: 1, kind: input, shape index: {}]
  %s2 = inlined_call_operand.hbm [shape: f32[64,256], index: 2, kind: input, shape index: {}]
  %s3 = inlined_call_operand.vmem [shape: f32[1,256], index: 3, kind: input, shape index: {}]
  %s4 = inlined_call_operand.hbm [shape: f32[64,256], index: 4, kind: input, shape index: {}]
  %s5 = inlined_call_operand.hbm [shape: f32[64,256], index: 5, kind: input, shape index: {}]
  %s6 = inlined_call_operand.vmem [shape: f32[1,256], index: 6, kind: input, shape index: {}]
  %s7 = inlined_call_operand.hbm [shape: f32[8,64], index: 7, kind: output, shape index: {}]
  %s8 = sld [smem:[#allocation0]]
  $region58: #{tpu_custom_call.1} parent=0
    _
  %s10 = ssub.s32 1, %s8
  %s11 = scalar_select 0, %s10, %s8
  $region1: #{tpu_custom_call.1} parent=0
    #allocation2 [shape = 'u8[4096]{0}', space=vmem, size = 0x1000, scoped, tag = 'input window, operand 0, single buffered']
    #allocation3 [shape = 's32[1]{0}', space=sflag, size = 0x4, scoped, tag = 'scoped memory for tpu_custom_call.1']
    #allocation4 [shape = 's32[1]{0}', space=sflag, size = 0x4, scoped, tag = 'scoped memory for tpu_custom_call.1']
    #allocation5 [shape = 'u8[16384]{0}', space=vmem, size = 0x4000, scoped, tag = 'input window, operand 1, single buffered']
    #allocation6 [shape = 's32[1]{0}', space=sflag, size = 0x4, scoped, tag = 'scoped memory for tpu_custom_call.1']
    #allocation7 [shape = 'u8[65536]{0}', space=vmem, size = 0x10000, scoped, tag = 'input window, operand 2, single buffered']
    #allocation8 [shape = 'u8[65536]{0}', space=vmem, size = 0x10000, scoped, tag = 'input window, operand 4, single buffered']
    #allocation9 [shape = 's32[1]{0}', space=sflag, size = 0x4, scoped, tag = 'scoped memory for tpu_custom_call.1']
    #allocation10 [shape = 'u8[65536]{0}', space=vmem, size = 0x10000, scoped, tag = 'input window, operand 5, single buffered']
    #allocation11 [shape = 'u8[4096]{0}', space=vmem, size = 0x1000, scoped, tag = 'output window, operand 0, single buffered']
    %12 = vsyncpa [#allocation3], 0
    %13 = vsyncpa [#allocation6], 0
    %14 = vsyncpa [#allocation9], 0
    %15 = vsyncpa [#allocation4], 0
    // Predicated region
    $region2: #{tpu_custom_call.1} parent=1 // pred_check
      _
    $region3: #{tpu_custom_call.1} parent=1 // pred_check_branch
      %17 = sbr.rel (0) target = $region5
    $region4: #{tpu_custom_call.1} parent=1 // pred_region
      %s19 = ssub.s32 128, 128
      %20 = vsyncadd [#allocation3], %s19
      %s22 = sshll.u32 [#allocation2], 4
      %s23 = int_to_ptr.vmem [resolvable:$true] %s22
      %25 = dma.hbm_to_vmem [thread:$0]  %s0, 128, %s23, [#allocation3]
    $region5: #{tpu_custom_call.1} parent=1 // pred_fallthru
      _
    // Predicated region
    $region6: #{tpu_custom_call.1} parent=1 // pred_check
      _
    $region7: #{tpu_custom_call.1} parent=1 // pred_check_branch
      %27 = sbr.rel (0) target = $region9
    $region8: #{tpu_custom_call.1} parent=1 // pred_region
      %s29 = ssub.s32 512, 512
      %30 = vsyncadd [#allocation6], %s29
      %s31 = sshll.u32 [#allocation5], 4
      %s32 = int_to_ptr.vmem [resolvable:$true] %s31
      %37 = dma.hbm_to_vmem [thread:$0]  %s1, 512, %s32, [#allocation6], 256, 256, 16
    $region9: #{tpu_custom_call.1} parent=1 // pred_fallthru
      _
    // Predicated region
    $region10: #{tpu_custom_call.1} parent=1 // pred_check
      _
    $region11: #{tpu_custom_call.1} parent=1 // pred_check_branch
      %39 = sbr.rel (0) target = $region13
    $region12: #{tpu_custom_call.1} parent=1 // pred_region
      %s41 = ssub.s32 2048, 2048
      %42 = vsyncadd [#allocation6], %s41
      %s43 = sshll.u32 [#allocation7], 4
      %s44 = int_to_ptr.vmem [resolvable:$true] %s43
      %49 = dma.hbm_to_vmem [thread:$0]  %s2, 2048, %s44, [#allocation6], 256, 256, 16
    $region13: #{tpu_custom_call.1} parent=1 // pred_fallthru
      _
    // Predicated region
    $region14: #{tpu_custom_call.1} parent=1 // pred_check
      _
    $region15: #{tpu_custom_call.1} parent=1 // pred_check_branch
      %51 = sbr.rel (0) target = $region17
    $region16: #{tpu_custom_call.1} parent=1 // pred_region
      _
    $region17: #{tpu_custom_call.1} parent=1 // pred_fallthru
      _
    // Predicated region
    $region18: #{tpu_custom_call.1} parent=1 // pred_check
      _
    $region19: #{tpu_custom_call.1} parent=1 // pred_check_branch
      %53 = sbr.rel (0) target = $region21
    $region20: #{tpu_custom_call.1} parent=1 // pred_region
      %s55 = ssub.s32 2048, 2048
      %56 = vsyncadd [#allocation9], %s55
      %s57 = sshll.u32 [#allocation8], 4
      %s58 = int_to_ptr.vmem [resolvable:$true] %s57
      %63 = dma.hbm_to_vmem [thread:$0]  %s4, 2048, %s58, [#allocation9], 256, 256, 16
    $region21: #{tpu_custom_call.1} parent=1 // pred_fallthru
      _
    // Predicated region
    $region22: #{tpu_custom_call.1} parent=1 // pred_check
      _
    $region23: #{tpu_custom_call.1} parent=1 // pred_check_branch
      %65 = sbr.rel (0) target = $region25
    $region24: #{tpu_custom_call.1} parent=1 // pred_region
      %s67 = ssub.s32 2048, 2048
      %68 = vsyncadd [#allocation9], %s67
      %s69 = sshll.u32 [#allocation10], 4
      %s70 = int_to_ptr.vmem [resolvable:$true] %s69
      %75 = dma.hbm_to_vmem [thread:$0]  %s5, 2048, %s70, [#allocation9], 256, 256, 16
    $region25: #{tpu_custom_call.1} parent=1 // pred_fallthru
      _
    // Predicated region
    $region26: #{tpu_custom_call.1} parent=1 // pred_check
      _
    $region27: #{tpu_custom_call.1} parent=1 // pred_check_branch
      %77 = sbr.rel (0) target = $region29
    $region28: #{tpu_custom_call.1} parent=1 // pred_region
      _
    $region29: #{tpu_custom_call.1} parent=1 // pred_fallthru
      _
    // Predicated region
    $region30: #{tpu_custom_call.1} parent=1 // pred_check
      _
    $region31: #{tpu_custom_call.1} parent=1 // pred_check_branch
      %79 = sbr.rel (0) target = $region33
    $region32: #{tpu_custom_call.1} parent=1 // pred_region
      %80 = dma.done [#allocation3], 128
    $region33: #{tpu_custom_call.1} parent=1 // pred_fallthru
      _
    // Predicated region
    $region34: #{tpu_custom_call.1} parent=1 // pred_check
      _
    $region35: #{tpu_custom_call.1} parent=1 // pred_check_branch
      %82 = sbr.rel (0) target = $region37
    $region36: #{tpu_custom_call.1} parent=1 // pred_region
      %83 = dma.done [#allocation6], 512
    $region37: #{tpu_custom_call.1} parent=1 // pred_fallthru
      _
    // Predicated region
    $region38: #{tpu_custom_call.1} parent=1 // pred_check
      _
    $region39: #{tpu_custom_call.1} parent=1 // pred_check_branch
      %85 = sbr.rel (0) target = $region41
    $region40: #{tpu_custom_call.1} parent=1 // pred_region
      %86 = dma.done [#allocation6], 2048
    $region41: #{tpu_custom_call.1} parent=1 // pred_fallthru
      _
    // Predicated region
    $region42: #{tpu_custom_call.1} parent=1 // pred_check
      _
    $region43: #{tpu_custom_call.1} parent=1 // pred_check_branch
      %88 = sbr.rel (0) target = $region45
    $region44: #{tpu_custom_call.1} parent=1 // pred_region
      %89 = dma.done [#allocation9], 2048
    $region45: #{tpu_custom_call.1} parent=1 // pred_fallthru
      _
    // Predicated region
    $region46: #{tpu_custom_call.1} parent=1 // pred_check
      _
    $region47: #{tpu_custom_call.1} parent=1 // pred_check_branch
      %91 = sbr.rel (0) target = $region49
    $region48: #{tpu_custom_call.1} parent=1 // pred_region
      %92 = dma.done [#allocation9], 2048
    $region49: #{tpu_custom_call.1} parent=1 // pred_fallthru
      _
    %v93 = vlaneseq
    %v94 = vand.u32 %v93, 127
    %v95 = vadd.s32 %v94, 128
    %vm96 = vcmp.lt.s32.totalorder %v94, 0
    %v97 = vsub.s32 0, %v94
    %v98 = vsel %vm96, %v97, %v94
    %v99 = vshrl.u32 %v98, 6
    %v100 = vand.u32 %v98, 63
    %v101 = vsub.s32 0, %v100
    %v102 = vsel %vm96, %v101, %v100
    %vm103 = vcmp.lt.s32.totalorder %v95, 0
    %v104 = vsub.s32 0, %v95
    %v105 = vsel %vm103, %v104, %v95
    %v106 = vshrl.u32 %v105, 6
    %v107 = vand.u32 %v105, 63
    %v108 = vsub.s32 0, %v107
    %v109 = vsel %vm103, %v108, %v107
    %vm110 = vcmp.ne.s32.totalorder %v102, 0
    %vm111 = vcmp.ne.s32.totalorder %v109, 0
    %vm112 = vcmp.lt.s32.totalorder %v102, 0
    %vm113 = vcmp.lt.s32.totalorder %v109, 0
    %vm114 = vmand %vm112, %vm110
    %vm115 = vmand %vm113, %vm111
    %v116 = vadd.s32 %v102, 64
    %v117 = vadd.s32 %v109, 64
    %v118 = vsel %vm114, %v116, %v102
    %v119 = vsel %vm115, %v117, %v109
    %vm120 = vcmp.lt.s32.totalorder %v118, 32
    %vm121 = vcmp.lt.s32.totalorder %v119, 32
    %vm122 = vcmp.lt.s32.totalorder %v94, 32
    %v123 = vld [vmem:[#allocation2] sm:$0xff]
    %v124 = vld [vmem:[#allocation5] sm:$0xff]
    %v125 = vld [vmem:[#allocation5 + $0x8] sm:$0xff]
    %v126 = vld [vmem:[#allocation5 + $0x10] sm:$0xff]
    %v127 = vld [vmem:[#allocation5 + $0x18] sm:$0xff]
    %v128 = vld [vmem:[#allocation7] sm:$0xff]
    %v129 = vld [vmem:[#allocation7 + $0x8] sm:$0xff]
    %v130 = vld [vmem:[#allocation7 + $0x10] sm:$0xff]
    %v131 = vld [vmem:[#allocation7 + $0x18] sm:$0xff]
    %v132 = vld [vmem:[#allocation7 + $0x20] sm:$0xff]
    %v133 = vld [vmem:[#allocation7 + $0x28] sm:$0xff]
    %v134 = vld [vmem:[#allocation7 + $0x30] sm:$0xff]
    %v135 = vld [vmem:[#allocation7 + $0x38] sm:$0xff]
    %v136 = vld [vmem:[#allocation7 + $0x40] sm:$0xff]
    %v137 = vld [vmem:[#allocation7 + $0x48] sm:$0xff]
    %v138 = vld [vmem:[#allocation7 + $0x50] sm:$0xff]
    %v139 = vld [vmem:[#allocation7 + $0x58] sm:$0xff]
    %v140 = vld [vmem:[#allocation7 + $0x60] sm:$0xff]
    %v141 = vld [vmem:[#allocation7 + $0x68] sm:$0xff]
    %v142 = vld [vmem:[#allocation7 + $0x70] sm:$0xff]
    %v143 = vld [vmem:[#allocation7 + $0x78] sm:$0xff]
    %v144 = vld [vmem:[%s3] sm:$0x3]
    %v146 = vlaneseq
    %v147 = vshrl.u32 %v146, 7
    %v148 = vsub.s32 0, %v147
    %v149 = vrot.slane %v144, %v148
    %v150 = vlaneseq
    %v151 = vshrl.u32 %v150, 7
    %v152 = vsub.s32 1, %v151
    %v153 = vrot.slane %v144, %v152
    %vm156 = vcmask 130048
    %v158 = vsel %vm156, %v123, 0
    %160 = vmatprep.subr.mxu0 0.0
    %161 = vmatpush1.msra.mxu0 0.0
    %162 = vmatprep.subr.mxu0 0.0
    %163 = vmatpush1.msra.mxu0 0.0
    %164 = vmatprep.subr.mxu0 0.0
    %165 = vmatpush1.msra.mxu0 0.0
    %166 = vmatprep.subr.mxu0 0.0
    %167 = vmatpush1.msra.mxu0 0.0
    %168 = vmatprep.subr.mxu0 0.0
    %169 = vmatpush1.msra.mxu0 0.0
    %170 = vmatprep.subr.mxu0 0.0
    %171 = vmatpush1.msra.mxu0 0.0
    %172 = vmatprep.subr.mxu0 0.0
    %173 = vmatpush1.msra.mxu0 0.0
    %174 = vmatprep.subr.mxu0 0.0
    %175 = vmatpush1.msra.mxu0 0.0
    %176 = vmatprep.subr.mxu0 0.0
    %177 = vmatpush1.msra.mxu0 0.0
    %178 = vmatprep.subr.mxu0 0.0
    %179 = vmatpush1.msra.mxu0 0.0
    %180 = vmatprep.subr.mxu0 0.0
    %181 = vmatpush1.msra.mxu0 0.0
    %182 = vmatprep.subr.mxu0 0.0
    %183 = vmatpush1.msra.mxu0 0.0
    %184 = vmatprep.subr.mxu0 0.0
    %185 = vmatpush1.msra.mxu0 0.0
    %186 = vmatprep.subr.mxu0 0.0
    %187 = vmatpush1.msra.mxu0 0.0
    %188 = vmatprep.subr.mxu0 %v127
    %189 = vmatpush1.msra.mxu0 %v126
    %190 = vmatprep.subr.mxu0 %v125
    %191 = vmatpush1.msra.mxu0 %v124
    %192 = vmatprep.subr.mxu0 0.0
    %193 = vmatpush2.msra.mxu0 0.0
    %194 = vmatprep.subr.mxu0 0.0
    %195 = vmatpush2.msra.mxu0 0.0
    %196 = vmatprep.subr.mxu0 0.0
    %197 = vmatpush2.msra.mxu0 0.0
    %198 = vmatprep.subr.mxu0 0.0
    %199 = vmatpush2.msra.mxu0 0.0
    %200 = vmatprep.subr.mxu0 0.0
    %201 = vmatpush2.msra.mxu0 0.0
    %202 = vmatprep.subr.mxu0 0.0
    %203 = vmatpush2.msra.mxu0 0.0
    %204 = vmatprep.subr.mxu0 0.0
    %205 = vmatpush2.msra.mxu0 0.0
    %206 = vmatprep.subr.mxu0 0.0
    %207 = vmatpush2.msra.mxu0 0.0
    %208 = vmatprep.subr.mxu0 0.0
    %209 = vmatpush2.msra.mxu0 0.0
    %210 = vmatprep.subr.mxu0 0.0
    %211 = vmatpush2.msra.mxu0 0.0
    %212 = vmatprep.subr.mxu0 0.0
    %213 = vmatpush2.msra.mxu0 0.0
    %214 = vmatprep.subr.mxu0 0.0
    %215 = vmatpush2.msra.mxu0 0.0
    %216 = vmatprep.subr.mxu0 0.0
    %217 = vmatpush2.msra.mxu0 0.0
    %218 = vmatprep.subr.mxu0 0.0
    %219 = vmatpush2.msra.mxu0 0.0
    %220 = vmatprep.subr.mxu0 0.0
    %221 = vmatpush2.msra.mxu0 0.0
    %222 = vmatprep.subr.mxu0 0.0
    %223 = vmatpush2.msra.mxu0 0.0
    %224 = vmatprep.mubr.f32.mxu0 0.0
    %225 = vmatmul.mubr.f32.gmra.mxu0 %v158
    %v226 = vpop.f32.mrf.mxu0
    %v227 = vadd.f32 %v149, %v226
    %v228 = vpop.f32.mrf.mxu0
    %v229 = vadd.f32 %v153, %v228
    %230 = vdwg.mxu0
    %v233 = vrot.slane %v227, 7
    %v234 = vrot.slane %v229, 7
    %v237 = vsel %vm120, %v227, %v233
    %v238 = vsel %vm121, %v229, %v234
    %vm239 = vcmask 523264
    %v241 = vsel %vm239, 0.0, 0
    %243 = vmatprep.subr.mxu0 0.0
    %244 = vmatpush1.msra.mxu0 0.0
    %245 = vmatprep.subr.mxu0 0.0
    %246 = vmatpush1.msra.mxu0 0.0
    %247 = vmatprep.subr.mxu0 0.0
    %248 = vmatpush1.msra.mxu0 0.0
    %249 = vmatprep.subr.mxu0 0.0
    %250 = vmatpush1.msra.mxu0 0.0
    %251 = vmatprep.subr.mxu0 0.0
    %252 = vmatpush1.msra.mxu0 0.0
    %253 = vmatprep.subr.mxu0 0.0
    %254 = vmatpush1.msra.mxu0 0.0
    %255 = vmatprep.subr.mxu0 0.0
    %256 = vmatpush1.msra.mxu0 0.0
    %257 = vmatprep.subr.mxu0 0.0
    %258 = vmatpush1.msra.mxu0 0.0
    %259 = vmatprep.subr.mxu0 %v143
    %260 = vmatpush1.msra.mxu0 %v142
    %261 = vmatprep.subr.mxu0 %v141
    %262 = vmatpush1.msra.mxu0 %v140
    %263 = vmatprep.subr.mxu0 %v139
    %264 = vmatpush1.msra.mxu0 %v138
    %265 = vmatprep.subr.mxu0 %v137
    %266 = vmatpush1.msra.mxu0 %v136
    %267 = vmatprep.subr.mxu0 %v135
    %268 = vmatpush1.msra.mxu0 %v134
    %269 = vmatprep.subr.mxu0 %v133
    %270 = vmatpush1.msra.mxu0 %v132
    %271 = vmatprep.subr.mxu0 %v131
    %272 = vmatpush1.msra.mxu0 %v130
    %273 = vmatprep.subr.mxu0 %v129
    %274 = vmatpush1.msra.mxu0 %v128
    %275 = vmatprep.subr.mxu0 0.0
    %276 = vmatpush2.msra.mxu0 0.0
    %277 = vmatprep.subr.mxu0 0.0
    %278 = vmatpush2.msra.mxu0 0.0
    %279 = vmatprep.subr.mxu0 0.0
    %280 = vmatpush2.msra.mxu0 0.0
    %281 = vmatprep.subr.mxu0 0.0
    %282 = vmatpush2.msra.mxu0 0.0
    %283 = vmatprep.subr.mxu0 0.0
    %284 = vmatpush2.msra.mxu0 0.0
    %285 = vmatprep.subr.mxu0 0.0
    %286 = vmatpush2.msra.mxu0 0.0
    %287 = vmatprep.subr.mxu0 0.0
    %288 = vmatpush2.msra.mxu0 0.0
    %289 = vmatprep.subr.mxu0 0.0
    %290 = vmatpush2.msra.mxu0 0.0
    %291 = vmatprep.subr.mxu0 0.0
    %292 = vmatpush2.msra.mxu0 0.0
    %293 = vmatprep.subr.mxu0 0.0
    %294 = vmatpush2.msra.mxu0 0.0
    %295 = vmatprep.subr.mxu0 0.0
    %296 = vmatpush2.msra.mxu0 0.0
    %297 = vmatprep.subr.mxu0 0.0
    %298 = vmatpush2.msra.mxu0 0.0
    %299 = vmatprep.subr.mxu0 0.0
    %300 = vmatpush2.msra.mxu0 0.0
    %301 = vmatprep.subr.mxu0 0.0
    %302 = vmatpush2.msra.mxu0 0.0
    %303 = vmatprep.subr.mxu0 0.0
    %304 = vmatpush2.msra.mxu0 0.0
    %305 = vmatprep.subr.mxu0 0.0
    %306 = vmatpush2.msra.mxu0 0.0
    %307 = vmatprep.mubr.f32.mxu0 0.0
    %308 = vmatmul.mubr.f32.gmra.mxu0 %v241
    %v309 = vpop.f32.mrf.mxu0
    %v310 = vadd.f32 0.0, %v309
    %v311 = vpop.f32.mrf.mxu0
    %v312 = vadd.f32 0.0, %v311
    %313 = vdwg.mxu0
    %v314 = vadd.f32 %v237, %v310
    %v315 = vadd.f32 %v238, %v312
    %v316 = vxor.u32 %v314, 2147483648
    %v317 = vxor.u32 %v315, 2147483648
    %v318 = vmul.f32 %v316, 1.442695
    %v319 = vpow.pop %v318
    %v320 = vmul.f32 %v317, 1.442695
    %v321 = vpow.pop %v320
    %v322 = vadd.f32 %v319, 1.0
    %v323 = vadd.f32 %v321, 1.0
    %v324 = vrcp.pop %v322
    %v325 = vmul.f32 1.0, %v324
    %v326 = vrcp.pop %v323
    %v327 = vmul.f32 1.0, %v326
    %v328 = vmul.f32 %v327, 2.0
    %v329 = vsub.f32 %v328, 1.0
    %v330 = vmul.f32 %v325, 0.0
    %v331 = vmul.f32 %v325, %v329
    %333 = vrot.lane.b32.xlu0 %v331, 64
    %v334 = vpop.permute.xlu0 %333
    %v336 = vadd.f32 %v330, %v334
    %v337 = vtanh.pop %v336
    %v338 = vmul.f32 %v327, %v337
    %v339 = vrot.slane %v227, 5
    %v340 = vrot.slane %v229, 5
    %v343 = vsel %vm120, %v227, %v339
    %v344 = vsel %vm121, %v229, %v340
    %346 = vrot.lane.b32.xlu0 %v338, 64
    %v347 = vpop.permute.xlu0 %346
    %v348 = vsel %vm239, %v347, 0
    %350 = vmatprep.subr.mxu0 0.0
    %351 = vmatpush1.msra.mxu0 0.0
    %352 = vmatprep.subr.mxu0 0.0
    %353 = vmatpush1.msra.mxu0 0.0
    %354 = vmatprep.subr.mxu0 0.0
    %355 = vmatpush1.msra.mxu0 0.0
    %356 = vmatprep.subr.mxu0 0.0
    %357 = vmatpush1.msra.mxu0 0.0
    %358 = vmatprep.subr.mxu0 0.0
    %359 = vmatpush1.msra.mxu0 0.0
    %360 = vmatprep.subr.mxu0 0.0
    %361 = vmatpush1.msra.mxu0 0.0
    %362 = vmatprep.subr.mxu0 0.0
    %363 = vmatpush1.msra.mxu0 0.0
    %364 = vmatprep.subr.mxu0 0.0
    %365 = vmatpush1.msra.mxu0 0.0
    %366 = vmatprep.subr.mxu0 %v143
    %367 = vmatpush1.msra.mxu0 %v142
    %368 = vmatprep.subr.mxu0 %v141
    %369 = vmatpush1.msra.mxu0 %v140
    %370 = vmatprep.subr.mxu0 %v139
    %371 = vmatpush1.msra.mxu0 %v138
    %372 = vmatprep.subr.mxu0 %v137
    %373 = vmatpush1.msra.mxu0 %v136
    %374 = vmatprep.subr.mxu0 %v135
    %375 = vmatpush1.msra.mxu0 %v134
    %376 = vmatprep.subr.mxu0 %v133
    %377 = vmatpush1.msra.mxu0 %v132
    %378 = vmatprep.subr.mxu0 %v131
    %379 = vmatpush1.msra.mxu0 %v130
    %380 = vmatprep.subr.mxu0 %v129
    %381 = vmatpush1.msra.mxu0 %v128
    %382 = vmatprep.subr.mxu0 0.0
    %383 = vmatpush2.msra.mxu0 0.0
    %384 = vmatprep.subr.mxu0 0.0
    %385 = vmatpush2.msra.mxu0 0.0
    %386 = vmatprep.subr.mxu0 0.0
    %387 = vmatpush2.msra.mxu0 0.0
    %388 = vmatprep.subr.mxu0 0.0
    %389 = vmatpush2.msra.mxu0 0.0
    %390 = vmatprep.subr.mxu0 0.0
    %391 = vmatpush2.msra.mxu0 0.0
    %392 = vmatprep.subr.mxu0 0.0
    %393 = vmatpush2.msra.mxu0 0.0
    %394 = vmatprep.subr.mxu0 0.0
    %395 = vmatpush2.msra.mxu0 0.0
    %396 = vmatprep.subr.mxu0 0.0
    %397 = vmatpush2.msra.mxu0 0.0
    %398 = vmatprep.subr.mxu0 0.0
    %399 = vmatpush2.msra.mxu0 0.0
    %400 = vmatprep.subr.mxu0 0.0
    %401 = vmatpush2.msra.mxu0 0.0
    %402 = vmatprep.subr.mxu0 0.0
    %403 = vmatpush2.msra.mxu0 0.0
    %404 = vmatprep.subr.mxu0 0.0
    %405 = vmatpush2.msra.mxu0 0.0
    %406 = vmatprep.subr.mxu0 0.0
    %407 = vmatpush2.msra.mxu0 0.0
    %408 = vmatprep.subr.mxu0 0.0
    %409 = vmatpush2.msra.mxu0 0.0
    %410 = vmatprep.subr.mxu0 0.0
    %411 = vmatpush2.msra.mxu0 0.0
    %412 = vmatprep.subr.mxu0 0.0
    %413 = vmatpush2.msra.mxu0 0.0
    %414 = vmatprep.mubr.f32.mxu0 0.0
    %415 = vmatmul.mubr.f32.gmra.mxu0 %v348
    %v416 = vpop.f32.mrf.mxu0
    %v417 = vadd.f32 0.0, %v416
    %v418 = vpop.f32.mrf.mxu0
    %v419 = vadd.f32 0.0, %v418
    %420 = vdwg.mxu0
    %v423 = vrot.slane %v417, 7
    %v424 = vrot.slane %v419, 7
    %v427 = vadd.f32 %v343, %v423
    %v428 = vadd.f32 %v344, %v424
    %v429 = vxor.u32 %v427, 2147483648
    %v430 = vxor.u32 %v428, 2147483648
    %v431 = vmul.f32 %v429, 1.442695
    %v432 = vpow.pop %v431
    %v433 = vmul.f32 %v430, 1.442695
    %v434 = vpow.pop %v433
    %v435 = vadd.f32 %v432, 1.0
    %v436 = vadd.f32 %v434, 1.0
    %v437 = vrcp.pop %v435
    %v438 = vmul.f32 1.0, %v437
    %v439 = vrcp.pop %v436
    %v440 = vmul.f32 1.0, %v439
    %v441 = vmul.f32 %v440, 2.0
    %v442 = vsub.f32 %v441, 1.0
    %v444 = vrot.slane %v336, 7
    %v446 = vmul.f32 %v438, %v444
    %v447 = vmul.f32 %v438, %v442
    %449 = vrot.lane.b32.xlu0 %v447, 64
    %v450 = vpop.permute.xlu0 %449
    %v452 = vadd.f32 %v446, %v450
    %v453 = vtanh.pop %v452
    %v454 = vmul.f32 %v440, %v453
    %v455 = vrot.slane %v227, 3
    %v456 = vrot.slane %v229, 3
    %v459 = vsel %vm120, %v227, %v455
    %v460 = vsel %vm121, %v229, %v456
    %v462 = vrot.slane %v454, 1
    %463 = vrot.lane.b32.xlu0 %v462, 64
    %v464 = vpop.permute.xlu0 %463
    %v465 = vsel %vm239, %v464, 0
    %467 = vmatprep.subr.mxu0 0.0
    %468 = vmatpush1.msra.mxu0 0.0
    %469 = vmatprep.subr.mxu0 0.0
    %470 = vmatpush1.msra.mxu0 0.0
    %471 = vmatprep.subr.mxu0 0.0
    %472 = vmatpush1.msra.mxu0 0.0
    %473 = vmatprep.subr.mxu0 0.0
    %474 = vmatpush1.msra.mxu0 0.0
    %475 = vmatprep.subr.mxu0 0.0
    %476 = vmatpush1.msra.mxu0 0.0
    %477 = vmatprep.subr.mxu0 0.0
    %478 = vmatpush1.msra.mxu0 0.0
    %479 = vmatprep.subr.mxu0 0.0
    %480 = vmatpush1.msra.mxu0 0.0
    %481 = vmatprep.subr.mxu0 0.0
    %482 = vmatpush1.msra.mxu0 0.0
    %483 = vmatprep.subr.mxu0 %v143
    %484 = vmatpush1.msra.mxu0 %v142
    %485 = vmatprep.subr.mxu0 %v141
    %486 = vmatpush1.msra.mxu0 %v140
    %487 = vmatprep.subr.mxu0 %v139
    %488 = vmatpush1.msra.mxu0 %v138
    %489 = vmatprep.subr.mxu0 %v137
    %490 = vmatpush1.msra.mxu0 %v136
    %491 = vmatprep.subr.mxu0 %v135
    %492 = vmatpush1.msra.mxu0 %v134
    %493 = vmatprep.subr.mxu0 %v133
    %494 = vmatpush1.msra.mxu0 %v132
    %495 = vmatprep.subr.mxu0 %v131
    %496 = vmatpush1.msra.mxu0 %v130
    %497 = vmatprep.subr.mxu0 %v129
    %498 = vmatpush1.msra.mxu0 %v128
    %499 = vmatprep.subr.mxu0 0.0
    %500 = vmatpush2.msra.mxu0 0.0
    %501 = vmatprep.subr.mxu0 0.0
    %502 = vmatpush2.msra.mxu0 0.0
    %503 = vmatprep.subr.mxu0 0.0
    %504 = vmatpush2.msra.mxu0 0.0
    %505 = vmatprep.subr.mxu0 0.0
    %506 = vmatpush2.msra.mxu0 0.0
    %507 = vmatprep.subr.mxu0 0.0
    %508 = vmatpush2.msra.mxu0 0.0
    %509 = vmatprep.subr.mxu0 0.0
    %510 = vmatpush2.msra.mxu0 0.0
    %511 = vmatprep.subr.mxu0 0.0
    %512 = vmatpush2.msra.mxu0 0.0
    %513 = vmatprep.subr.mxu0 0.0
    %514 = vmatpush2.msra.mxu0 0.0
    %515 = vmatprep.subr.mxu0 0.0
    %516 = vmatpush2.msra.mxu0 0.0
    %517 = vmatprep.subr.mxu0 0.0
    %518 = vmatpush2.msra.mxu0 0.0
    %519 = vmatprep.subr.mxu0 0.0
    %520 = vmatpush2.msra.mxu0 0.0
    %521 = vmatprep.subr.mxu0 0.0
    %522 = vmatpush2.msra.mxu0 0.0
    %523 = vmatprep.subr.mxu0 0.0
    %524 = vmatpush2.msra.mxu0 0.0
    %525 = vmatprep.subr.mxu0 0.0
    %526 = vmatpush2.msra.mxu0 0.0
    %527 = vmatprep.subr.mxu0 0.0
    %528 = vmatpush2.msra.mxu0 0.0
    %529 = vmatprep.subr.mxu0 0.0
    %530 = vmatpush2.msra.mxu0 0.0
    %531 = vmatprep.mubr.f32.mxu0 0.0
    %532 = vmatmul.mubr.f32.gmra.mxu0 %v465
    %v533 = vpop.f32.mrf.mxu0
    %v534 = vadd.f32 0.0, %v533
    %v535 = vpop.f32.mrf.mxu0
    %v536 = vadd.f32 0.0, %v535
    %537 = vdwg.mxu0
    %v540 = vrot.slane %v534, 6
    %v541 = vrot.slane %v536, 6
    %v544 = vadd.f32 %v459, %v540
    %v545 = vadd.f32 %v460, %v541
    %v546 = vxor.u32 %v544, 2147483648
    %v547 = vxor.u32 %v545, 2147483648
    %v548 = vmul.f32 %v546, 1.442695
    %v549 = vpow.pop %v548
    %v550 = vmul.f32 %v547, 1.442695
    %v551 = vpow.pop %v550
    %v552 = vadd.f32 %v549, 1.0
    %v553 = vadd.f32 %v551, 1.0
    %v554 = vrcp.pop %v552
    %v555 = vmul.f32 1.0, %v554
    %v556 = vrcp.pop %v553
    %v557 = vmul.f32 1.0, %v556
    %v558 = vmul.f32 %v557, 2.0
    %v559 = vsub.f32 %v558, 1.0
    %v561 = vrot.slane %v452, 7
    %v563 = vmul.f32 %v555, %v561
    %v564 = vmul.f32 %v555, %v559
    %566 = vrot.lane.b32.xlu0 %v564, 64
    %v567 = vpop.permute.xlu0 %566
    %v569 = vadd.f32 %v563, %v567
    %v570 = vtanh.pop %v569
    %v571 = vmul.f32 %v557, %v570
    %v572 = vrot.slane %v227, 1
    %v573 = vrot.slane %v229, 1
    %v576 = vsel %vm120, %v227, %v572
    %v577 = vsel %vm121, %v229, %v573
    %v579 = vrot.slane %v571, 2
    %580 = vrot.lane.b32.xlu0 %v579, 64
    %v581 = vpop.permute.xlu0 %580
    %v582 = vsel %vm239, %v581, 0
    %584 = vmatprep.subr.mxu0 0.0
    %585 = vmatpush1.msra.mxu0 0.0
    %586 = vmatprep.subr.mxu0 0.0
    %587 = vmatpush1.msra.mxu0 0.0
    %588 = vmatprep.subr.mxu0 0.0
    %589 = vmatpush1.msra.mxu0 0.0
    %590 = vmatprep.subr.mxu0 0.0
    %591 = vmatpush1.msra.mxu0 0.0
    %592 = vmatprep.subr.mxu0 0.0
    %593 = vmatpush1.msra.mxu0 0.0
    %594 = vmatprep.subr.mxu0 0.0
    %595 = vmatpush1.msra.mxu0 0.0
    %596 = vmatprep.subr.mxu0 0.0
    %597 = vmatpush1.msra.mxu0 0.0
    %598 = vmatprep.subr.mxu0 0.0
    %599 = vmatpush1.msra.mxu0 0.0
    %600 = vmatprep.subr.mxu0 %v143
    %601 = vmatpush1.msra.mxu0 %v142
    %602 = vmatprep.subr.mxu0 %v141
    %603 = vmatpush1.msra.mxu0 %v140
    %604 = vmatprep.subr.mxu0 %v139
    %605 = vmatpush1.msra.mxu0 %v138
    %606 = vmatprep.subr.mxu0 %v137
    %607 = vmatpush1.msra.mxu0 %v136
    %608 = vmatprep.subr.mxu0 %v135
    %609 = vmatpush1.msra.mxu0 %v134
    %610 = vmatprep.subr.mxu0 %v133
    %611 = vmatpush1.msra.mxu0 %v132
    %612 = vmatprep.subr.mxu0 %v131
    %613 = vmatpush1.msra.mxu0 %v130
    %614 = vmatprep.subr.mxu0 %v129
    %615 = vmatpush1.msra.mxu0 %v128
    %616 = vmatprep.subr.mxu0 0.0
    %617 = vmatpush2.msra.mxu0 0.0
    %618 = vmatprep.subr.mxu0 0.0
    %619 = vmatpush2.msra.mxu0 0.0
    %620 = vmatprep.subr.mxu0 0.0
    %621 = vmatpush2.msra.mxu0 0.0
    %622 = vmatprep.subr.mxu0 0.0
    %623 = vmatpush2.msra.mxu0 0.0
    %624 = vmatprep.subr.mxu0 0.0
    %625 = vmatpush2.msra.mxu0 0.0
    %626 = vmatprep.subr.mxu0 0.0
    %627 = vmatpush2.msra.mxu0 0.0
    %628 = vmatprep.subr.mxu0 0.0
    %629 = vmatpush2.msra.mxu0 0.0
    %630 = vmatprep.subr.mxu0 0.0
    %631 = vmatpush2.msra.mxu0 0.0
    %632 = vmatprep.subr.mxu0 0.0
    %633 = vmatpush2.msra.mxu0 0.0
    %634 = vmatprep.subr.mxu0 0.0
    %635 = vmatpush2.msra.mxu0 0.0
    %636 = vmatprep.subr.mxu0 0.0
    %637 = vmatpush2.msra.mxu0 0.0
    %638 = vmatprep.subr.mxu0 0.0
    %639 = vmatpush2.msra.mxu0 0.0
    %640 = vmatprep.subr.mxu0 0.0
    %641 = vmatpush2.msra.mxu0 0.0
    %642 = vmatprep.subr.mxu0 0.0
    %643 = vmatpush2.msra.mxu0 0.0
    %644 = vmatprep.subr.mxu0 0.0
    %645 = vmatpush2.msra.mxu0 0.0
    %646 = vmatprep.subr.mxu0 0.0
    %647 = vmatpush2.msra.mxu0 0.0
    %648 = vmatprep.mubr.f32.mxu0 0.0
    %649 = vmatmul.mubr.f32.gmra.mxu0 %v582
    %v650 = vpop.f32.mrf.mxu0
    %v651 = vadd.f32 0.0, %v650
    %v652 = vpop.f32.mrf.mxu0
    %v653 = vadd.f32 0.0, %v652
    %654 = vdwg.mxu0
    %v657 = vrot.slane %v651, 5
    %v658 = vrot.slane %v653, 5
    %v661 = vadd.f32 %v576, %v657
    %v662 = vadd.f32 %v577, %v658
    %v663 = vxor.u32 %v661, 2147483648
    %v664 = vxor.u32 %v662, 2147483648
    %v665 = vmul.f32 %v663, 1.442695
    %v666 = vpow.pop %v665
    %v667 = vmul.f32 %v664, 1.442695
    %v668 = vpow.pop %v667
    %v669 = vadd.f32 %v666, 1.0
    %v670 = vadd.f32 %v668, 1.0
    %v671 = vrcp.pop %v669
    %v672 = vmul.f32 1.0, %v671
    %v673 = vrcp.pop %v670
    %v674 = vmul.f32 1.0, %v673
    %v675 = vmul.f32 %v674, 2.0
    %v676 = vsub.f32 %v675, 1.0
    %v678 = vrot.slane %v569, 7
    %v680 = vmul.f32 %v672, %v678
    %v681 = vmul.f32 %v672, %v676
    %683 = vrot.lane.b32.xlu0 %v681, 64
    %v684 = vpop.permute.xlu0 %683
    %v686 = vadd.f32 %v680, %v684
    %v687 = vtanh.pop %v686
    %v688 = vmul.f32 %v674, %v687
    %v690 = vrot.slane %v688, 3
    %691 = vrot.lane.b32.xlu0 %v690, 64
    %v692 = vpop.permute.xlu0 %691
    %v693 = vsel %vm239, %v692, 0
    %695 = vmatprep.subr.mxu0 0.0
    %696 = vmatpush1.msra.mxu0 0.0
    %697 = vmatprep.subr.mxu0 0.0
    %698 = vmatpush1.msra.mxu0 0.0
    %699 = vmatprep.subr.mxu0 0.0
    %700 = vmatpush1.msra.mxu0 0.0
    %701 = vmatprep.subr.mxu0 0.0
    %702 = vmatpush1.msra.mxu0 0.0
    %703 = vmatprep.subr.mxu0 0.0
    %704 = vmatpush1.msra.mxu0 0.0
    %705 = vmatprep.subr.mxu0 0.0
    %706 = vmatpush1.msra.mxu0 0.0
    %707 = vmatprep.subr.mxu0 0.0
    %708 = vmatpush1.msra.mxu0 0.0
    %709 = vmatprep.subr.mxu0 0.0
    %710 = vmatpush1.msra.mxu0 0.0
    %711 = vmatprep.subr.mxu0 %v143
    %712 = vmatpush1.msra.mxu0 %v142
    %713 = vmatprep.subr.mxu0 %v141
    %714 = vmatpush1.msra.mxu0 %v140
    %715 = vmatprep.subr.mxu0 %v139
    %716 = vmatpush1.msra.mxu0 %v138
    %717 = vmatprep.subr.mxu0 %v137
    %718 = vmatpush1.msra.mxu0 %v136
    %719 = vmatprep.subr.mxu0 %v135
    %720 = vmatpush1.msra.mxu0 %v134
    %721 = vmatprep.subr.mxu0 %v133
    %722 = vmatpush1.msra.mxu0 %v132
    %723 = vmatprep.subr.mxu0 %v131
    %724 = vmatpush1.msra.mxu0 %v130
    %725 = vmatprep.subr.mxu0 %v129
    %726 = vmatpush1.msra.mxu0 %v128
    %727 = vmatprep.subr.mxu0 0.0
    %728 = vmatpush2.msra.mxu0 0.0
    %729 = vmatprep.subr.mxu0 0.0
    %730 = vmatpush2.msra.mxu0 0.0
    %731 = vmatprep.subr.mxu0 0.0
    %732 = vmatpush2.msra.mxu0 0.0
    %733 = vmatprep.subr.mxu0 0.0
    %734 = vmatpush2.msra.mxu0 0.0
    %735 = vmatprep.subr.mxu0 0.0
    %736 = vmatpush2.msra.mxu0 0.0
    %737 = vmatprep.subr.mxu0 0.0
    %738 = vmatpush2.msra.mxu0 0.0
    %739 = vmatprep.subr.mxu0 0.0
    %740 = vmatpush2.msra.mxu0 0.0
    %741 = vmatprep.subr.mxu0 0.0
    %742 = vmatpush2.msra.mxu0 0.0
    %743 = vmatprep.subr.mxu0 0.0
    %744 = vmatpush2.msra.mxu0 0.0
    %745 = vmatprep.subr.mxu0 0.0
    %746 = vmatpush2.msra.mxu0 0.0
    %747 = vmatprep.subr.mxu0 0.0
    %748 = vmatpush2.msra.mxu0 0.0
    %749 = vmatprep.subr.mxu0 0.0
    %750 = vmatpush2.msra.mxu0 0.0
    %751 = vmatprep.subr.mxu0 0.0
    %752 = vmatpush2.msra.mxu0 0.0
    %753 = vmatprep.subr.mxu0 0.0
    %754 = vmatpush2.msra.mxu0 0.0
    %755 = vmatprep.subr.mxu0 0.0
    %756 = vmatpush2.msra.mxu0 0.0
    %757 = vmatprep.subr.mxu0 0.0
    %758 = vmatpush2.msra.mxu0 0.0
    %759 = vmatprep.mubr.f32.mxu0 0.0
    %760 = vmatmul.mubr.f32.gmra.mxu0 %v693
    %v761 = vpop.f32.mrf.mxu0
    %v762 = vadd.f32 0.0, %v761
    %v763 = vpop.f32.mrf.mxu0
    %v764 = vadd.f32 0.0, %v763
    %765 = vdwg.mxu0
    %v768 = vrot.slane %v762, 4
    %v769 = vrot.slane %v764, 4
    %v772 = vadd.f32 %v237, %v768
    %v773 = vadd.f32 %v238, %v769
    %v774 = vxor.u32 %v772, 2147483648
    %v775 = vxor.u32 %v773, 2147483648
    %v776 = vmul.f32 %v774, 1.442695
    %v777 = vpow.pop %v776
    %v778 = vmul.f32 %v775, 1.442695
    %v779 = vpow.pop %v778
    %v780 = vadd.f32 %v777, 1.0
    %v781 = vadd.f32 %v779, 1.0
    %v782 = vrcp.pop %v780
    %v783 = vmul.f32 1.0, %v782
    %v784 = vrcp.pop %v781
    %v785 = vmul.f32 1.0, %v784
    %v786 = vmul.f32 %v785, 2.0
    %v787 = vsub.f32 %v786, 1.0
    %v789 = vrot.slane %v686, 7
    %v791 = vmul.f32 %v783, %v789
    %v792 = vmul.f32 %v783, %v787
    %794 = vrot.lane.b32.xlu0 %v792, 64
    %v795 = vpop.permute.xlu0 %794
    %v797 = vadd.f32 %v791, %v795
    %v798 = vtanh.pop %v797
    %v799 = vmul.f32 %v785, %v798
    %v801 = vrot.slane %v799, 4
    %802 = vrot.lane.b32.xlu0 %v801, 64
    %v803 = vpop.permute.xlu0 %802
    %v804 = vsel %vm239, %v803, 0
    %806 = vmatprep.subr.mxu0 0.0
    %807 = vmatpush1.msra.mxu0 0.0
    %808 = vmatprep.subr.mxu0 0.0
    %809 = vmatpush1.msra.mxu0 0.0
    %810 = vmatprep.subr.mxu0 0.0
    %811 = vmatpush1.msra.mxu0 0.0
    %812 = vmatprep.subr.mxu0 0.0
    %813 = vmatpush1.msra.mxu0 0.0
    %814 = vmatprep.subr.mxu0 0.0
    %815 = vmatpush1.msra.mxu0 0.0
    %816 = vmatprep.subr.mxu0 0.0
    %817 = vmatpush1.msra.mxu0 0.0
    %818 = vmatprep.subr.mxu0 0.0
    %819 = vmatpush1.msra.mxu0 0.0
    %820 = vmatprep.subr.mxu0 0.0
    %821 = vmatpush1.msra.mxu0 0.0
    %822 = vmatprep.subr.mxu0 %v143
    %823 = vmatpush1.msra.mxu0 %v142
    %824 = vmatprep.subr.mxu0 %v141
    %825 = vmatpush1.msra.mxu0 %v140
    %826 = vmatprep.subr.mxu0 %v139
    %827 = vmatpush1.msra.mxu0 %v138
    %828 = vmatprep.subr.mxu0 %v137
    %829 = vmatpush1.msra.mxu0 %v136
    %830 = vmatprep.subr.mxu0 %v135
    %831 = vmatpush1.msra.mxu0 %v134
    %832 = vmatprep.subr.mxu0 %v133
    %833 = vmatpush1.msra.mxu0 %v132
    %834 = vmatprep.subr.mxu0 %v131
    %835 = vmatpush1.msra.mxu0 %v130
    %836 = vmatprep.subr.mxu0 %v129
    %837 = vmatpush1.msra.mxu0 %v128
    %838 = vmatprep.subr.mxu0 0.0
    %839 = vmatpush2.msra.mxu0 0.0
    %840 = vmatprep.subr.mxu0 0.0
    %841 = vmatpush2.msra.mxu0 0.0
    %842 = vmatprep.subr.mxu0 0.0
    %843 = vmatpush2.msra.mxu0 0.0
    %844 = vmatprep.subr.mxu0 0.0
    %845 = vmatpush2.msra.mxu0 0.0
    %846 = vmatprep.subr.mxu0 0.0
    %847 = vmatpush2.msra.mxu0 0.0
    %848 = vmatprep.subr.mxu0 0.0
    %849 = vmatpush2.msra.mxu0 0.0
    %850 = vmatprep.subr.mxu0 0.0
    %851 = vmatpush2.msra.mxu0 0.0
    %852 = vmatprep.subr.mxu0 0.0
    %853 = vmatpush2.msra.mxu0 0.0
    %854 = vmatprep.subr.mxu0 0.0
    %855 = vmatpush2.msra.mxu0 0.0
    %856 = vmatprep.subr.mxu0 0.0
    %857 = vmatpush2.msra.mxu0 0.0
    %858 = vmatprep.subr.mxu0 0.0
    %859 = vmatpush2.msra.mxu0 0.0
    %860 = vmatprep.subr.mxu0 0.0
    %861 = vmatpush2.msra.mxu0 0.0
    %862 = vmatprep.subr.mxu0 0.0
    %863 = vmatpush2.msra.mxu0 0.0
    %864 = vmatprep.subr.mxu0 0.0
    %865 = vmatpush2.msra.mxu0 0.0
    %866 = vmatprep.subr.mxu0 0.0
    %867 = vmatpush2.msra.mxu0 0.0
    %868 = vmatprep.subr.mxu0 0.0
    %869 = vmatpush2.msra.mxu0 0.0
    %870 = vmatprep.mubr.f32.mxu0 0.0
    %871 = vmatmul.mubr.f32.gmra.mxu0 %v804
    %v872 = vpop.f32.mrf.mxu0
    %v873 = vadd.f32 0.0, %v872
    %v874 = vpop.f32.mrf.mxu0
    %v875 = vadd.f32 0.0, %v874
    %876 = vdwg.mxu0
    %v879 = vrot.slane %v873, 3
    %v880 = vrot.slane %v875, 3
    %v883 = vadd.f32 %v343, %v879
    %v884 = vadd.f32 %v344, %v880
    %v885 = vxor.u32 %v883, 2147483648
    %v886 = vxor.u32 %v884, 2147483648
    %v887 = vmul.f32 %v885, 1.442695
    %v888 = vpow.pop %v887
    %v889 = vmul.f32 %v886, 1.442695
    %v890 = vpow.pop %v889
    %v891 = vadd.f32 %v888, 1.0
    %v892 = vadd.f32 %v890, 1.0
    %v893 = vrcp.pop %v891
    %v894 = vmul.f32 1.0, %v893
    %v895 = vrcp.pop %v892
    %v896 = vmul.f32 1.0, %v895
    %v897 = vmul.f32 %v896, 2.0
    %v898 = vsub.f32 %v897, 1.0
    %v900 = vrot.slane %v797, 7
    %v902 = vmul.f32 %v894, %v900
    %v903 = vmul.f32 %v894, %v898
    %905 = vrot.lane.b32.xlu0 %v903, 64
    %v906 = vpop.permute.xlu0 %905
    %v908 = vadd.f32 %v902, %v906
    %v909 = vtanh.pop %v908
    %v910 = vmul.f32 %v896, %v909
    %v912 = vrot.slane %v910, 5
    %913 = vrot.lane.b32.xlu0 %v912, 64
    %v914 = vpop.permute.xlu0 %913
    %v915 = vsel %vm239, %v914, 0
    %917 = vmatprep.subr.mxu0 0.0
    %918 = vmatpush1.msra.mxu0 0.0
    %919 = vmatprep.subr.mxu0 0.0
    %920 = vmatpush1.msra.mxu0 0.0
    %921 = vmatprep.subr.mxu0 0.0
    %922 = vmatpush1.msra.mxu0 0.0
    %923 = vmatprep.subr.mxu0 0.0
    %924 = vmatpush1.msra.mxu0 0.0
    %925 = vmatprep.subr.mxu0 0.0
    %926 = vmatpush1.msra.mxu0 0.0
    %927 = vmatprep.subr.mxu0 0.0
    %928 = vmatpush1.msra.mxu0 0.0
    %929 = vmatprep.subr.mxu0 0.0
    %930 = vmatpush1.msra.mxu0 0.0
    %931 = vmatprep.subr.mxu0 0.0
    %932 = vmatpush1.msra.mxu0 0.0
    %933 = vmatprep.subr.mxu0 %v143
    %934 = vmatpush1.msra.mxu0 %v142
    %935 = vmatprep.subr.mxu0 %v141
    %936 = vmatpush1.msra.mxu0 %v140
    %937 = vmatprep.subr.mxu0 %v139
    %938 = vmatpush1.msra.mxu0 %v138
    %939 = vmatprep.subr.mxu0 %v137
    %940 = vmatpush1.msra.mxu0 %v136
    %941 = vmatprep.subr.mxu0 %v135
    %942 = vmatpush1.msra.mxu0 %v134
    %943 = vmatprep.subr.mxu0 %v133
    %944 = vmatpush1.msra.mxu0 %v132
    %945 = vmatprep.subr.mxu0 %v131
    %946 = vmatpush1.msra.mxu0 %v130
    %947 = vmatprep.subr.mxu0 %v129
    %948 = vmatpush1.msra.mxu0 %v128
    %949 = vmatprep.subr.mxu0 0.0
    %950 = vmatpush2.msra.mxu0 0.0
    %951 = vmatprep.subr.mxu0 0.0
    %952 = vmatpush2.msra.mxu0 0.0
    %953 = vmatprep.subr.mxu0 0.0
    %954 = vmatpush2.msra.mxu0 0.0
    %955 = vmatprep.subr.mxu0 0.0
    %956 = vmatpush2.msra.mxu0 0.0
    %957 = vmatprep.subr.mxu0 0.0
    %958 = vmatpush2.msra.mxu0 0.0
    %959 = vmatprep.subr.mxu0 0.0
    %960 = vmatpush2.msra.mxu0 0.0
    %961 = vmatprep.subr.mxu0 0.0
    %962 = vmatpush2.msra.mxu0 0.0
    %963 = vmatprep.subr.mxu0 0.0
    %964 = vmatpush2.msra.mxu0 0.0
    %965 = vmatprep.subr.mxu0 0.0
    %966 = vmatpush2.msra.mxu0 0.0
    %967 = vmatprep.subr.mxu0 0.0
    %968 = vmatpush2.msra.mxu0 0.0
    %969 = vmatprep.subr.mxu0 0.0
    %970 = vmatpush2.msra.mxu0 0.0
    %971 = vmatprep.subr.mxu0 0.0
    %972 = vmatpush2.msra.mxu0 0.0
    %973 = vmatprep.subr.mxu0 0.0
    %974 = vmatpush2.msra.mxu0 0.0
    %975 = vmatprep.subr.mxu0 0.0
    %976 = vmatpush2.msra.mxu0 0.0
    %977 = vmatprep.subr.mxu0 0.0
    %978 = vmatpush2.msra.mxu0 0.0
    %979 = vmatprep.subr.mxu0 0.0
    %980 = vmatpush2.msra.mxu0 0.0
    %981 = vmatprep.mubr.f32.mxu0 0.0
    %982 = vmatmul.mubr.f32.gmra.mxu0 %v915
    %v983 = vpop.f32.mrf.mxu0
    %v984 = vadd.f32 0.0, %v983
    %v985 = vpop.f32.mrf.mxu0
    %v986 = vadd.f32 0.0, %v985
    %987 = vdwg.mxu0
    %v990 = vrot.slane %v984, 2
    %v991 = vrot.slane %v986, 2
    %v994 = vadd.f32 %v459, %v990
    %v995 = vadd.f32 %v460, %v991
    %v996 = vxor.u32 %v994, 2147483648
    %v997 = vxor.u32 %v995, 2147483648
    %v998 = vmul.f32 %v996, 1.442695
    %v999 = vpow.pop %v998
    %v1000 = vmul.f32 %v997, 1.442695
    %v1001 = vpow.pop %v1000
    %v1002 = vadd.f32 %v999, 1.0
    %v1003 = vadd.f32 %v1001, 1.0
    %v1004 = vrcp.pop %v1002
    %v1005 = vmul.f32 1.0, %v1004
    %v1006 = vrcp.pop %v1003
    %v1007 = vmul.f32 1.0, %v1006
    %v1008 = vmul.f32 %v1007, 2.0
    %v1009 = vsub.f32 %v1008, 1.0
    %v1011 = vrot.slane %v908, 7
    %v1013 = vmul.f32 %v1005, %v1011
    %v1014 = vmul.f32 %v1005, %v1009
    %1016 = vrot.lane.b32.xlu0 %v1014, 64
    %v1017 = vpop.permute.xlu0 %1016
    %v1019 = vadd.f32 %v1013, %v1017
    %v1020 = vtanh.pop %v1019
    %v1021 = vmul.f32 %v1007, %v1020
    %v1023 = vrot.slane %v1021, 6
    %1024 = vrot.lane.b32.xlu0 %v1023, 64
    %v1025 = vpop.permute.xlu0 %1024
    %v1026 = vsel %vm239, %v1025, 0
    %1028 = vmatprep.subr.mxu0 0.0
    %1029 = vmatpush1.msra.mxu0 0.0
    %1030 = vmatprep.subr.mxu0 0.0
    %1031 = vmatpush1.msra.mxu0 0.0
    %1032 = vmatprep.subr.mxu0 0.0
    %1033 = vmatpush1.msra.mxu0 0.0
    %1034 = vmatprep.subr.mxu0 0.0
    %1035 = vmatpush1.msra.mxu0 0.0
    %1036 = vmatprep.subr.mxu0 0.0
    %1037 = vmatpush1.msra.mxu0 0.0
    %1038 = vmatprep.subr.mxu0 0.0
    %1039 = vmatpush1.msra.mxu0 0.0
    %1040 = vmatprep.subr.mxu0 0.0
    %1041 = vmatpush1.msra.mxu0 0.0
    %1042 = vmatprep.subr.mxu0 0.0
    %1043 = vmatpush1.msra.mxu0 0.0
    %1044 = vmatprep.subr.mxu0 %v143
    %1045 = vmatpush1.msra.mxu0 %v142
    %1046 = vmatprep.subr.mxu0 %v141
    %1047 = vmatpush1.msra.mxu0 %v140
    %1048 = vmatprep.subr.mxu0 %v139
    %1049 = vmatpush1.msra.mxu0 %v138
    %1050 = vmatprep.subr.mxu0 %v137
    %1051 = vmatpush1.msra.mxu0 %v136
    %1052 = vmatprep.subr.mxu0 %v135
    %1053 = vmatpush1.msra.mxu0 %v134
    %1054 = vmatprep.subr.mxu0 %v133
    %1055 = vmatpush1.msra.mxu0 %v132
    %1056 = vmatprep.subr.mxu0 %v131
    %1057 = vmatpush1.msra.mxu0 %v130
    %1058 = vmatprep.subr.mxu0 %v129
    %1059 = vmatpush1.msra.mxu0 %v128
    %1060 = vmatprep.subr.mxu0 0.0
    %1061 = vmatpush2.msra.mxu0 0.0
    %1062 = vmatprep.subr.mxu0 0.0
    %1063 = vmatpush2.msra.mxu0 0.0
    %1064 = vmatprep.subr.mxu0 0.0
    %1065 = vmatpush2.msra.mxu0 0.0
    %1066 = vmatprep.subr.mxu0 0.0
    %1067 = vmatpush2.msra.mxu0 0.0
    %1068 = vmatprep.subr.mxu0 0.0
    %1069 = vmatpush2.msra.mxu0 0.0
    %1070 = vmatprep.subr.mxu0 0.0
    %1071 = vmatpush2.msra.mxu0 0.0
    %1072 = vmatprep.subr.mxu0 0.0
    %1073 = vmatpush2.msra.mxu0 0.0
    %1074 = vmatprep.subr.mxu0 0.0
    %1075 = vmatpush2.msra.mxu0 0.0
    %1076 = vmatprep.subr.mxu0 0.0
    %1077 = vmatpush2.msra.mxu0 0.0
    %1078 = vmatprep.subr.mxu0 0.0
    %1079 = vmatpush2.msra.mxu0 0.0
    %1080 = vmatprep.subr.mxu0 0.0
    %1081 = vmatpush2.msra.mxu0 0.0
    %1082 = vmatprep.subr.mxu0 0.0
    %1083 = vmatpush2.msra.mxu0 0.0
    %1084 = vmatprep.subr.mxu0 0.0
    %1085 = vmatpush2.msra.mxu0 0.0
    %1086 = vmatprep.subr.mxu0 0.0
    %1087 = vmatpush2.msra.mxu0 0.0
    %1088 = vmatprep.subr.mxu0 0.0
    %1089 = vmatpush2.msra.mxu0 0.0
    %1090 = vmatprep.subr.mxu0 0.0
    %1091 = vmatpush2.msra.mxu0 0.0
    %1092 = vmatprep.mubr.f32.mxu0 0.0
    %1093 = vmatmul.mubr.f32.gmra.mxu0 %v1026
    %v1094 = vpop.f32.mrf.mxu0
    %v1095 = vadd.f32 0.0, %v1094
    %v1096 = vpop.f32.mrf.mxu0
    %v1097 = vadd.f32 0.0, %v1096
    %1098 = vdwg.mxu0
    %v1101 = vrot.slane %v1095, 1
    %v1102 = vrot.slane %v1097, 1
    %v1105 = vadd.f32 %v576, %v1101
    %v1106 = vadd.f32 %v577, %v1102
    %v1107 = vxor.u32 %v1105, 2147483648
    %v1108 = vxor.u32 %v1106, 2147483648
    %v1109 = vmul.f32 %v1107, 1.442695
    %v1110 = vpow.pop %v1109
    %v1111 = vmul.f32 %v1108, 1.442695
    %v1112 = vpow.pop %v1111
    %v1113 = vadd.f32 %v1110, 1.0
    %v1114 = vadd.f32 %v1112, 1.0
    %v1115 = vrcp.pop %v1113
    %v1116 = vmul.f32 1.0, %v1115
    %v1117 = vrcp.pop %v1114
    %v1118 = vmul.f32 1.0, %v1117
    %v1119 = vmul.f32 %v1118, 2.0
    %v1120 = vsub.f32 %v1119, 1.0
    %v1122 = vrot.slane %v1019, 7
    %v1124 = vmul.f32 %v1116, %v1122
    %v1125 = vmul.f32 %v1116, %v1120
    %1127 = vrot.lane.b32.xlu0 %v1125, 64
    %v1128 = vpop.permute.xlu0 %1127
    %v1130 = vadd.f32 %v1124, %v1128
    %v1131 = vtanh.pop %v1130
    %v1132 = vmul.f32 %v1118, %v1131
    %v1135 = vrot.slane %v1132, 7
    %1136 = vrot.lane.b32.xlu0 %v1135, 64
    %v1137 = vpop.permute.xlu0 %1136
    %v1139 = vsel %vm122, %v347, %v1137
    %vm1140 = vcmask 516096
    %1141 = vst.msk [vmem:[#allocation11] sm:$0x1] %vm1140, %v1139
    %v1144 = vsel %vm122, %v464, %v1025
    %1145 = vst.msk [vmem:[#allocation11 + $0x1] sm:$0x1] %vm1140, %v1144
    %v1148 = vsel %vm122, %v581, %v914
    %1149 = vst.msk [vmem:[#allocation11 + $0x2] sm:$0x1] %vm1140, %v1148
    %v1152 = vsel %vm122, %v692, %v803
    %1153 = vst.msk [vmem:[#allocation11 + $0x3] sm:$0x1] %vm1140, %v1152
    %v1154 = vsel %vm122, %v803, %v692
    %1155 = vst.msk [vmem:[#allocation11 + $0x4] sm:$0x1] %vm1140, %v1154
    %v1156 = vsel %vm122, %v914, %v581
    %1157 = vst.msk [vmem:[#allocation11 + $0x5] sm:$0x1] %vm1140, %v1156
    %v1158 = vsel %vm122, %v1025, %v464
    %1159 = vst.msk [vmem:[#allocation11 + $0x6] sm:$0x1] %vm1140, %v1158
    %v1160 = vsel %vm122, %v1137, %v347
    %1161 = vst.msk [vmem:[#allocation11 + $0x7] sm:$0x1] %vm1140, %v1160
    %v1162 = vld [vmem:[#allocation11] sm:$0xff]
    %v1163 = vld [vmem:[#allocation8] sm:$0xff]
    %v1164 = vld [vmem:[#allocation8 + $0x8] sm:$0xff]
    %v1165 = vld [vmem:[#allocation8 + $0x10] sm:$0xff]
    %v1166 = vld [vmem:[#allocation8 + $0x18] sm:$0xff]
    %v1167 = vld [vmem:[#allocation8 + $0x20] sm:$0xff]
    %v1168 = vld [vmem:[#allocation8 + $0x28] sm:$0xff]
    %v1169 = vld [vmem:[#allocation8 + $0x30] sm:$0xff]
    %v1170 = vld [vmem:[#allocation8 + $0x38] sm:$0xff]
    %v1171 = vld [vmem:[#allocation8 + $0x40] sm:$0xff]
    %v1172 = vld [vmem:[#allocation8 + $0x48] sm:$0xff]
    %v1173 = vld [vmem:[#allocation8 + $0x50] sm:$0xff]
    %v1174 = vld [vmem:[#allocation8 + $0x58] sm:$0xff]
    %v1175 = vld [vmem:[#allocation8 + $0x60] sm:$0xff]
    %v1176 = vld [vmem:[#allocation8 + $0x68] sm:$0xff]
    %v1177 = vld [vmem:[#allocation8 + $0x70] sm:$0xff]
    %v1178 = vld [vmem:[#allocation8 + $0x78] sm:$0xff]
    %v1179 = vld [vmem:[#allocation10] sm:$0xff]
    %v1180 = vld [vmem:[#allocation10 + $0x8] sm:$0xff]
    %v1181 = vld [vmem:[#allocation10 + $0x10] sm:$0xff]
    %v1182 = vld [vmem:[#allocation10 + $0x18] sm:$0xff]
    %v1183 = vld [vmem:[#allocation10 + $0x20] sm:$0xff]
    %v1184 = vld [vmem:[#allocation10 + $0x28] sm:$0xff]
    %v1185 = vld [vmem:[#allocation10 + $0x30] sm:$0xff]
    %v1186 = vld [vmem:[#allocation10 + $0x38] sm:$0xff]
    %v1187 = vld [vmem:[#allocation10 + $0x40] sm:$0xff]
    %v1188 = vld [vmem:[#allocation10 + $0x48] sm:$0xff]
    %v1189 = vld [vmem:[#allocation10 + $0x50] sm:$0xff]
    %v1190 = vld [vmem:[#allocation10 + $0x58] sm:$0xff]
    %v1191 = vld [vmem:[#allocation10 + $0x60] sm:$0xff]
    %v1192 = vld [vmem:[#allocation10 + $0x68] sm:$0xff]
    %v1193 = vld [vmem:[#allocation10 + $0x70] sm:$0xff]
    %v1194 = vld [vmem:[#allocation10 + $0x78] sm:$0xff]
    %v1195 = vld [vmem:[%s6] sm:$0x3]
    %v1197 = vlaneseq
    %v1198 = vshrl.u32 %v1197, 7
    %v1199 = vsub.s32 0, %v1198
    %v1200 = vrot.slane %v1195, %v1199
    %v1201 = vlaneseq
    %v1202 = vshrl.u32 %v1201, 7
    %v1203 = vsub.s32 1, %v1202
    %v1204 = vrot.slane %v1195, %v1203
    %v1208 = vsel %vm239, %v1162, 0
    %1210 = vmatprep.subr.mxu0 0.0
    %1211 = vmatpush1.msra.mxu0 0.0
    %1212 = vmatprep.subr.mxu0 0.0
    %1213 = vmatpush1.msra.mxu0 0.0
    %1214 = vmatprep.subr.mxu0 0.0
    %1215 = vmatpush1.msra.mxu0 0.0
    %1216 = vmatprep.subr.mxu0 0.0
    %1217 = vmatpush1.msra.mxu0 0.0
    %1218 = vmatprep.subr.mxu0 0.0
    %1219 = vmatpush1.msra.mxu0 0.0
    %1220 = vmatprep.subr.mxu0 0.0
    %1221 = vmatpush1.msra.mxu0 0.0
    %1222 = vmatprep.subr.mxu0 0.0
    %1223 = vmatpush1.msra.mxu0 0.0
    %1224 = vmatprep.subr.mxu0 0.0
    %1225 = vmatpush1.msra.mxu0 0.0
    %1226 = vmatprep.subr.mxu0 %v1178
    %1227 = vmatpush1.msra.mxu0 %v1177
    %1228 = vmatprep.subr.mxu0 %v1176
    %1229 = vmatpush1.msra.mxu0 %v1175
    %1230 = vmatprep.subr.mxu0 %v1174
    %1231 = vmatpush1.msra.mxu0 %v1173
    %1232 = vmatprep.subr.mxu0 %v1172
    %1233 = vmatpush1.msra.mxu0 %v1171
    %1234 = vmatprep.subr.mxu0 %v1170
    %1235 = vmatpush1.msra.mxu0 %v1169
    %1236 = vmatprep.subr.mxu0 %v1168
    %1237 = vmatpush1.msra.mxu0 %v1167
    %1238 = vmatprep.subr.mxu0 %v1166
    %1239 = vmatpush1.msra.mxu0 %v1165
    %1240 = vmatprep.subr.mxu0 %v1164
    %1241 = vmatpush1.msra.mxu0 %v1163
    %1242 = vmatprep.subr.mxu0 0.0
    %1243 = vmatpush2.msra.mxu0 0.0
    %1244 = vmatprep.subr.mxu0 0.0
    %1245 = vmatpush2.msra.mxu0 0.0
    %1246 = vmatprep.subr.mxu0 0.0
    %1247 = vmatpush2.msra.mxu0 0.0
    %1248 = vmatprep.subr.mxu0 0.0
    %1249 = vmatpush2.msra.mxu0 0.0
    %1250 = vmatprep.subr.mxu0 0.0
    %1251 = vmatpush2.msra.mxu0 0.0
    %1252 = vmatprep.subr.mxu0 0.0
    %1253 = vmatpush2.msra.mxu0 0.0
    %1254 = vmatprep.subr.mxu0 0.0
    %1255 = vmatpush2.msra.mxu0 0.0
    %1256 = vmatprep.subr.mxu0 0.0
    %1257 = vmatpush2.msra.mxu0 0.0
    %1258 = vmatprep.subr.mxu0 0.0
    %1259 = vmatpush2.msra.mxu0 0.0
    %1260 = vmatprep.subr.mxu0 0.0
    %1261 = vmatpush2.msra.mxu0 0.0
    %1262 = vmatprep.subr.mxu0 0.0
    %1263 = vmatpush2.msra.mxu0 0.0
    %1264 = vmatprep.subr.mxu0 0.0
    %1265 = vmatpush2.msra.mxu0 0.0
    %1266 = vmatprep.subr.mxu0 0.0
    %1267 = vmatpush2.msra.mxu0 0.0
    %1268 = vmatprep.subr.mxu0 0.0
    %1269 = vmatpush2.msra.mxu0 0.0
    %1270 = vmatprep.subr.mxu0 0.0
    %1271 = vmatpush2.msra.mxu0 0.0
    %1272 = vmatprep.subr.mxu0 0.0
    %1273 = vmatpush2.msra.mxu0 0.0
    %1274 = vmatprep.mubr.f32.mxu0 0.0
    %1275 = vmatmul.mubr.f32.gmra.mxu0 %v1208
    %v1276 = vpop.f32.mrf.mxu0
    %v1277 = vadd.f32 %v1200, %v1276
    %v1278 = vpop.f32.mrf.mxu0
    %v1279 = vadd.f32 %v1204, %v1278
    %1280 = vdwg.mxu0
    %v1283 = vrot.slane %v1277, 7
    %v1284 = vrot.slane %v1279, 7
    %v1287 = vsel %vm120, %v1277, %v1283
    %v1288 = vsel %vm121, %v1279, %v1284
    %1289 = vmatprep.subr.mxu0 0.0
    %1290 = vmatpush1.msra.mxu0 0.0
    %1291 = vmatprep.subr.mxu0 0.0
    %1292 = vmatpush1.msra.mxu0 0.0
    %1293 = vmatprep.subr.mxu0 0.0
    %1294 = vmatpush1.msra.mxu0 0.0
    %1295 = vmatprep.subr.mxu0 0.0
    %1296 = vmatpush1.msra.mxu0 0.0
    %1297 = vmatprep.subr.mxu0 0.0
    %1298 = vmatpush1.msra.mxu0 0.0
    %1299 = vmatprep.subr.mxu0 0.0
    %1300 = vmatpush1.msra.mxu0 0.0
    %1301 = vmatprep.subr.mxu0 0.0
    %1302 = vmatpush1.msra.mxu0 0.0
    %1303 = vmatprep.subr.mxu0 0.0
    %1304 = vmatpush1.msra.mxu0 0.0
    %1305 = vmatprep.subr.mxu0 %v1194
    %1306 = vmatpush1.msra.mxu0 %v1193
    %1307 = vmatprep.subr.mxu0 %v1192
    %1308 = vmatpush1.msra.mxu0 %v1191
    %1309 = vmatprep.subr.mxu0 %v1190
    %1310 = vmatpush1.msra.mxu0 %v1189
    %1311 = vmatprep.subr.mxu0 %v1188
    %1312 = vmatpush1.msra.mxu0 %v1187
    %1313 = vmatprep.subr.mxu0 %v1186
    %1314 = vmatpush1.msra.mxu0 %v1185
    %1315 = vmatprep.subr.mxu0 %v1184
    %1316 = vmatpush1.msra.mxu0 %v1183
    %1317 = vmatprep.subr.mxu0 %v1182
    %1318 = vmatpush1.msra.mxu0 %v1181
    %1319 = vmatprep.subr.mxu0 %v1180
    %1320 = vmatpush1.msra.mxu0 %v1179
    %1321 = vmatprep.subr.mxu0 0.0
    %1322 = vmatpush2.msra.mxu0 0.0
    %1323 = vmatprep.subr.mxu0 0.0
    %1324 = vmatpush2.msra.mxu0 0.0
    %1325 = vmatprep.subr.mxu0 0.0
    %1326 = vmatpush2.msra.mxu0 0.0
    %1327 = vmatprep.subr.mxu0 0.0
    %1328 = vmatpush2.msra.mxu0 0.0
    %1329 = vmatprep.subr.mxu0 0.0
    %1330 = vmatpush2.msra.mxu0 0.0
    %1331 = vmatprep.subr.mxu0 0.0
    %1332 = vmatpush2.msra.mxu0 0.0
    %1333 = vmatprep.subr.mxu0 0.0
    %1334 = vmatpush2.msra.mxu0 0.0
    %1335 = vmatprep.subr.mxu0 0.0
    %1336 = vmatpush2.msra.mxu0 0.0
    %1337 = vmatprep.subr.mxu0 0.0
    %1338 = vmatpush2.msra.mxu0 0.0
    %1339 = vmatprep.subr.mxu0 0.0
    %1340 = vmatpush2.msra.mxu0 0.0
    %1341 = vmatprep.subr.mxu0 0.0
    %1342 = vmatpush2.msra.mxu0 0.0
    %1343 = vmatprep.subr.mxu0 0.0
    %1344 = vmatpush2.msra.mxu0 0.0
    %1345 = vmatprep.subr.mxu0 0.0
    %1346 = vmatpush2.msra.mxu0 0.0
    %1347 = vmatprep.subr.mxu0 0.0
    %1348 = vmatpush2.msra.mxu0 0.0
    %1349 = vmatprep.subr.mxu0 0.0
    %1350 = vmatpush2.msra.mxu0 0.0
    %1351 = vmatprep.subr.mxu0 0.0
    %1352 = vmatpush2.msra.mxu0 0.0
    %1353 = vmatprep.mubr.f32.mxu0 0.0
    %1354 = vmatmul.mubr.f32.gmra.mxu0 %v241
    %v1355 = vpop.f32.mrf.mxu0
    %v1356 = vadd.f32 0.0, %v1355
    %v1357 = vpop.f32.mrf.mxu0
    %v1358 = vadd.f32 0.0, %v1357
    %1359 = vdwg.mxu0
    %v1360 = vadd.f32 %v1287, %v1356
    %v1361 = vadd.f32 %v1288, %v1358
    %v1362 = vxor.u32 %v1360, 2147483648
    %v1363 = vxor.u32 %v1361, 2147483648
    %v1364 = vmul.f32 %v1362, 1.442695
    %v1365 = vpow.pop %v1364
    %v1366 = vmul.f32 %v1363, 1.442695
    %v1367 = vpow.pop %v1366
    %v1368 = vadd.f32 %v1365, 1.0
    %v1369 = vadd.f32 %v1367, 1.0
    %v1370 = vrcp.pop %v1368
    %v1371 = vmul.f32 1.0, %v1370
    %v1372 = vrcp.pop %v1369
    %v1373 = vmul.f32 1.0, %v1372
    %v1374 = vmul.f32 %v1373, 2.0
    %v1375 = vsub.f32 %v1374, 1.0
    %v1376 = vmul.f32 %v1371, 0.0
    %v1377 = vmul.f32 %v1371, %v1375
    %1379 = vrot.lane.b32.xlu0 %v1377, 64
    %v1380 = vpop.permute.xlu0 %1379
    %v1382 = vadd.f32 %v1376, %v1380
    %v1383 = vtanh.pop %v1382
    %v1384 = vmul.f32 %v1373, %v1383
    %v1385 = vrot.slane %v1277, 5
    %v1386 = vrot.slane %v1279, 5
    %v1389 = vsel %vm120, %v1277, %v1385
    %v1390 = vsel %vm121, %v1279, %v1386
    %1392 = vrot.lane.b32.xlu0 %v1384, 64
    %v1393 = vpop.permute.xlu0 %1392
    %v1394 = vsel %vm239, %v1393, 0
    %1396 = vmatprep.subr.mxu0 0.0
    %1397 = vmatpush1.msra.mxu0 0.0
    %1398 = vmatprep.subr.mxu0 0.0
    %1399 = vmatpush1.msra.mxu0 0.0
    %1400 = vmatprep.subr.mxu0 0.0
    %1401 = vmatpush1.msra.mxu0 0.0
    %1402 = vmatprep.subr.mxu0 0.0
    %1403 = vmatpush1.msra.mxu0 0.0
    %1404 = vmatprep.subr.mxu0 0.0
    %1405 = vmatpush1.msra.mxu0 0.0
    %1406 = vmatprep.subr.mxu0 0.0
    %1407 = vmatpush1.msra.mxu0 0.0
    %1408 = vmatprep.subr.mxu0 0.0
    %1409 = vmatpush1.msra.mxu0 0.0
    %1410 = vmatprep.subr.mxu0 0.0
    %1411 = vmatpush1.msra.mxu0 0.0
    %1412 = vmatprep.subr.mxu0 %v1194
    %1413 = vmatpush1.msra.mxu0 %v1193
    %1414 = vmatprep.subr.mxu0 %v1192
    %1415 = vmatpush1.msra.mxu0 %v1191
    %1416 = vmatprep.subr.mxu0 %v1190
    %1417 = vmatpush1.msra.mxu0 %v1189
    %1418 = vmatprep.subr.mxu0 %v1188
    %1419 = vmatpush1.msra.mxu0 %v1187
    %1420 = vmatprep.subr.mxu0 %v1186
    %1421 = vmatpush1.msra.mxu0 %v1185
    %1422 = vmatprep.subr.mxu0 %v1184
    %1423 = vmatpush1.msra.mxu0 %v1183
    %1424 = vmatprep.subr.mxu0 %v1182
    %1425 = vmatpush1.msra.mxu0 %v1181
    %1426 = vmatprep.subr.mxu0 %v1180
    %1427 = vmatpush1.msra.mxu0 %v1179
    %1428 = vmatprep.subr.mxu0 0.0
    %1429 = vmatpush2.msra.mxu0 0.0
    %1430 = vmatprep.subr.mxu0 0.0
    %1431 = vmatpush2.msra.mxu0 0.0
    %1432 = vmatprep.subr.mxu0 0.0
    %1433 = vmatpush2.msra.mxu0 0.0
    %1434 = vmatprep.subr.mxu0 0.0
    %1435 = vmatpush2.msra.mxu0 0.0
    %1436 = vmatprep.subr.mxu0 0.0
    %1437 = vmatpush2.msra.mxu0 0.0
    %1438 = vmatprep.subr.mxu0 0.0
    %1439 = vmatpush2.msra.mxu0 0.0
    %1440 = vmatprep.subr.mxu0 0.0
    %1441 = vmatpush2.msra.mxu0 0.0
    %1442 = vmatprep.subr.mxu0 0.0
    %1443 = vmatpush2.msra.mxu0 0.0
    %1444 = vmatprep.subr.mxu0 0.0
    %1445 = vmatpush2.msra.mxu0 0.0
    %1446 = vmatprep.subr.mxu0 0.0
    %1447 = vmatpush2.msra.mxu0 0.0
    %1448 = vmatprep.subr.mxu0 0.0
    %1449 = vmatpush2.msra.mxu0 0.0
    %1450 = vmatprep.subr.mxu0 0.0
    %1451 = vmatpush2.msra.mxu0 0.0
    %1452 = vmatprep.subr.mxu0 0.0
    %1453 = vmatpush2.msra.mxu0 0.0
    %1454 = vmatprep.subr.mxu0 0.0
    %1455 = vmatpush2.msra.mxu0 0.0
    %1456 = vmatprep.subr.mxu0 0.0
    %1457 = vmatpush2.msra.mxu0 0.0
    %1458 = vmatprep.subr.mxu0 0.0
    %1459 = vmatpush2.msra.mxu0 0.0
    %1460 = vmatprep.mubr.f32.mxu0 0.0
    %1461 = vmatmul.mubr.f32.gmra.mxu0 %v1394
    %v1462 = vpop.f32.mrf.mxu0
    %v1463 = vadd.f32 0.0, %v1462
    %v1464 = vpop.f32.mrf.mxu0
    %v1465 = vadd.f32 0.0, %v1464
    %1466 = vdwg.mxu0
    %v1469 = vrot.slane %v1463, 7
    %v1470 = vrot.slane %v1465, 7
    %v1473 = vadd.f32 %v1389, %v1469
    %v1474 = vadd.f32 %v1390, %v1470
    %v1475 = vxor.u32 %v1473, 2147483648
    %v1476 = vxor.u32 %v1474, 2147483648
    %v1477 = vmul.f32 %v1475, 1.442695
    %v1478 = vpow.pop %v1477
    %v1479 = vmul.f32 %v1476, 1.442695
    %v1480 = vpow.pop %v1479
    %v1481 = vadd.f32 %v1478, 1.0
    %v1482 = vadd.f32 %v1480, 1.0
    %v1483 = vrcp.pop %v1481
    %v1484 = vmul.f32 1.0, %v1483
    %v1485 = vrcp.pop %v1482
    %v1486 = vmul.f32 1.0, %v1485
    %v1487 = vmul.f32 %v1486, 2.0
    %v1488 = vsub.f32 %v1487, 1.0
    %v1490 = vrot.slane %v1382, 7
    %v1492 = vmul.f32 %v1484, %v1490
    %v1493 = vmul.f32 %v1484, %v1488
    %1495 = vrot.lane.b32.xlu0 %v1493, 64
    %v1496 = vpop.permute.xlu0 %1495
    %v1498 = vadd.f32 %v1492, %v1496
    %v1499 = vtanh.pop %v1498
    %v1500 = vmul.f32 %v1486, %v1499
    %v1501 = vrot.slane %v1277, 3
    %v1502 = vrot.slane %v1279, 3
    %v1505 = vsel %vm120, %v1277, %v1501
    %v1506 = vsel %vm121, %v1279, %v1502
    %v1508 = vrot.slane %v1500, 1
    %1509 = vrot.lane.b32.xlu0 %v1508, 64
    %v1510 = vpop.permute.xlu0 %1509
    %v1511 = vsel %vm239, %v1510, 0
    %1513 = vmatprep.subr.mxu0 0.0
    %1514 = vmatpush1.msra.mxu0 0.0
    %1515 = vmatprep.subr.mxu0 0.0
    %1516 = vmatpush1.msra.mxu0 0.0
    %1517 = vmatprep.subr.mxu0 0.0
    %1518 = vmatpush1.msra.mxu0 0.0
    %1519 = vmatprep.subr.mxu0 0.0
    %1520 = vmatpush1.msra.mxu0 0.0
    %1521 = vmatprep.subr.mxu0 0.0
    %1522 = vmatpush1.msra.mxu0 0.0
    %1523 = vmatprep.subr.mxu0 0.0
    %1524 = vmatpush1.msra.mxu0 0.0
    %1525 = vmatprep.subr.mxu0 0.0
    %1526 = vmatpush1.msra.mxu0 0.0
    %1527 = vmatprep.subr.mxu0 0.0
    %1528 = vmatpush1.msra.mxu0 0.0
    %1529 = vmatprep.subr.mxu0 %v1194
    %1530 = vmatpush1.msra.mxu0 %v1193
    %1531 = vmatprep.subr.mxu0 %v1192
    %1532 = vmatpush1.msra.mxu0 %v1191
    %1533 = vmatprep.subr.mxu0 %v1190
    %1534 = vmatpush1.msra.mxu0 %v1189
    %1535 = vmatprep.subr.mxu0 %v1188
    %1536 = vmatpush1.msra.mxu0 %v1187
    %1537 = vmatprep.subr.mxu0 %v1186
    %1538 = vmatpush1.msra.mxu0 %v1185
    %1539 = vmatprep.subr.mxu0 %v1184
    %1540 = vmatpush1.msra.mxu0 %v1183
    %1541 = vmatprep.subr.mxu0 %v1182
    %1542 = vmatpush1.msra.mxu0 %v1181
    %1543 = vmatprep.subr.mxu0 %v1180
    %1544 = vmatpush1.msra.mxu0 %v1179
    %1545 = vmatprep.subr.mxu0 0.0
    %1546 = vmatpush2.msra.mxu0 0.0
    %1547 = vmatprep.subr.mxu0 0.0
    %1548 = vmatpush2.msra.mxu0 0.0
    %1549 = vmatprep.subr.mxu0 0.0
    %1550 = vmatpush2.msra.mxu0 0.0
    %1551 = vmatprep.subr.mxu0 0.0
    %1552 = vmatpush2.msra.mxu0 0.0
    %1553 = vmatprep.subr.mxu0 0.0
    %1554 = vmatpush2.msra.mxu0 0.0
    %1555 = vmatprep.subr.mxu0 0.0
    %1556 = vmatpush2.msra.mxu0 0.0
    %1557 = vmatprep.subr.mxu0 0.0
    %1558 = vmatpush2.msra.mxu0 0.0
    %1559 = vmatprep.subr.mxu0 0.0
    %1560 = vmatpush2.msra.mxu0 0.0
    %1561 = vmatprep.subr.mxu0 0.0
    %1562 = vmatpush2.msra.mxu0 0.0
    %1563 = vmatprep.subr.mxu0 0.0
    %1564 = vmatpush2.msra.mxu0 0.0
    %1565 = vmatprep.subr.mxu0 0.0
    %1566 = vmatpush2.msra.mxu0 0.0
    %1567 = vmatprep.subr.mxu0 0.0
    %1568 = vmatpush2.msra.mxu0 0.0
    %1569 = vmatprep.subr.mxu0 0.0
    %1570 = vmatpush2.msra.mxu0 0.0
    %1571 = vmatprep.subr.mxu0 0.0
    %1572 = vmatpush2.msra.mxu0 0.0
    %1573 = vmatprep.subr.mxu0 0.0
    %1574 = vmatpush2.msra.mxu0 0.0
    %1575 = vmatprep.subr.mxu0 0.0
    %1576 = vmatpush2.msra.mxu0 0.0
    %1577 = vmatprep.mubr.f32.mxu0 0.0
    %1578 = vmatmul.mubr.f32.gmra.mxu0 %v1511
    %v1579 = vpop.f32.mrf.mxu0
    %v1580 = vadd.f32 0.0, %v1579
    %v1581 = vpop.f32.mrf.mxu0
    %v1582 = vadd.f32 0.0, %v1581
    %1583 = vdwg.mxu0
    %v1586 = vrot.slane %v1580, 6
    %v1587 = vrot.slane %v1582, 6
    %v1590 = vadd.f32 %v1505, %v1586
    %v1591 = vadd.f32 %v1506, %v1587
    %v1592 = vxor.u32 %v1590, 2147483648
    %v1593 = vxor.u32 %v1591, 2147483648
    %v1594 = vmul.f32 %v1592, 1.442695
    %v1595 = vpow.pop %v1594
    %v1596 = vmul.f32 %v1593, 1.442695
    %v1597 = vpow.pop %v1596
    %v1598 = vadd.f32 %v1595, 1.0
    %v1599 = vadd.f32 %v1597, 1.0
    %v1600 = vrcp.pop %v1598
    %v1601 = vmul.f32 1.0, %v1600
    %v1602 = vrcp.pop %v1599
    %v1603 = vmul.f32 1.0, %v1602
    %v1604 = vmul.f32 %v1603, 2.0
    %v1605 = vsub.f32 %v1604, 1.0
    %v1607 = vrot.slane %v1498, 7
    %v1609 = vmul.f32 %v1601, %v1607
    %v1610 = vmul.f32 %v1601, %v1605
    %1612 = vrot.lane.b32.xlu0 %v1610, 64
    %v1613 = vpop.permute.xlu0 %1612
    %v1615 = vadd.f32 %v1609, %v1613
    %v1616 = vtanh.pop %v1615
    %v1617 = vmul.f32 %v1603, %v1616
    %v1618 = vrot.slane %v1277, 1
    %v1619 = vrot.slane %v1279, 1
    %v1622 = vsel %vm120, %v1277, %v1618
    %v1623 = vsel %vm121, %v1279, %v1619
    %v1625 = vrot.slane %v1617, 2
    %1626 = vrot.lane.b32.xlu0 %v1625, 64
    %v1627 = vpop.permute.xlu0 %1626
    %v1628 = vsel %vm239, %v1627, 0
    %1630 = vmatprep.subr.mxu0 0.0
    %1631 = vmatpush1.msra.mxu0 0.0
    %1632 = vmatprep.subr.mxu0 0.0
    %1633 = vmatpush1.msra.mxu0 0.0
    %1634 = vmatprep.subr.mxu0 0.0
    %1635 = vmatpush1.msra.mxu0 0.0
    %1636 = vmatprep.subr.mxu0 0.0
    %1637 = vmatpush1.msra.mxu0 0.0
    %1638 = vmatprep.subr.mxu0 0.0
    %1639 = vmatpush1.msra.mxu0 0.0
    %1640 = vmatprep.subr.mxu0 0.0
    %1641 = vmatpush1.msra.mxu0 0.0
    %1642 = vmatprep.subr.mxu0 0.0
    %1643 = vmatpush1.msra.mxu0 0.0
    %1644 = vmatprep.subr.mxu0 0.0
    %1645 = vmatpush1.msra.mxu0 0.0
    %1646 = vmatprep.subr.mxu0 %v1194
    %1647 = vmatpush1.msra.mxu0 %v1193
    %1648 = vmatprep.subr.mxu0 %v1192
    %1649 = vmatpush1.msra.mxu0 %v1191
    %1650 = vmatprep.subr.mxu0 %v1190
    %1651 = vmatpush1.msra.mxu0 %v1189
    %1652 = vmatprep.subr.mxu0 %v1188
    %1653 = vmatpush1.msra.mxu0 %v1187
    %1654 = vmatprep.subr.mxu0 %v1186
    %1655 = vmatpush1.msra.mxu0 %v1185
    %1656 = vmatprep.subr.mxu0 %v1184
    %1657 = vmatpush1.msra.mxu0 %v1183
    %1658 = vmatprep.subr.mxu0 %v1182
    %1659 = vmatpush1.msra.mxu0 %v1181
    %1660 = vmatprep.subr.mxu0 %v1180
    %1661 = vmatpush1.msra.mxu0 %v1179
    %1662 = vmatprep.subr.mxu0 0.0
    %1663 = vmatpush2.msra.mxu0 0.0
    %1664 = vmatprep.subr.mxu0 0.0
    %1665 = vmatpush2.msra.mxu0 0.0
    %1666 = vmatprep.subr.mxu0 0.0
    %1667 = vmatpush2.msra.mxu0 0.0
    %1668 = vmatprep.subr.mxu0 0.0
    %1669 = vmatpush2.msra.mxu0 0.0
    %1670 = vmatprep.subr.mxu0 0.0
    %1671 = vmatpush2.msra.mxu0 0.0
    %1672 = vmatprep.subr.mxu0 0.0
    %1673 = vmatpush2.msra.mxu0 0.0
    %1674 = vmatprep.subr.mxu0 0.0
    %1675 = vmatpush2.msra.mxu0 0.0
    %1676 = vmatprep.subr.mxu0 0.0
    %1677 = vmatpush2.msra.mxu0 0.0
    %1678 = vmatprep.subr.mxu0 0.0
    %1679 = vmatpush2.msra.mxu0 0.0
    %1680 = vmatprep.subr.mxu0 0.0
    %1681 = vmatpush2.msra.mxu0 0.0
    %1682 = vmatprep.subr.mxu0 0.0
    %1683 = vmatpush2.msra.mxu0 0.0
    %1684 = vmatprep.subr.mxu0 0.0
    %1685 = vmatpush2.msra.mxu0 0.0
    %1686 = vmatprep.subr.mxu0 0.0
    %1687 = vmatpush2.msra.mxu0 0.0
    %1688 = vmatprep.subr.mxu0 0.0
    %1689 = vmatpush2.msra.mxu0 0.0
    %1690 = vmatprep.subr.mxu0 0.0
    %1691 = vmatpush2.msra.mxu0 0.0
    %1692 = vmatprep.subr.mxu0 0.0
    %1693 = vmatpush2.msra.mxu0 0.0
    %1694 = vmatprep.mubr.f32.mxu0 0.0
    %1695 = vmatmul.mubr.f32.gmra.mxu0 %v1628
    %v1696 = vpop.f32.mrf.mxu0
    %v1697 = vadd.f32 0.0, %v1696
    %v1698 = vpop.f32.mrf.mxu0
    %v1699 = vadd.f32 0.0, %v1698
    %1700 = vdwg.mxu0
    %v1703 = vrot.slane %v1697, 5
    %v1704 = vrot.slane %v1699, 5
    %v1707 = vadd.f32 %v1622, %v1703
    %v1708 = vadd.f32 %v1623, %v1704
    %v1709 = vxor.u32 %v1707, 2147483648
    %v1710 = vxor.u32 %v1708, 2147483648
    %v1711 = vmul.f32 %v1709, 1.442695
    %v1712 = vpow.pop %v1711
    %v1713 = vmul.f32 %v1710, 1.442695
    %v1714 = vpow.pop %v1713
    %v1715 = vadd.f32 %v1712, 1.0
    %v1716 = vadd.f32 %v1714, 1.0
    %v1717 = vrcp.pop %v1715
    %v1718 = vmul.f32 1.0, %v1717
    %v1719 = vrcp.pop %v1716
    %v1720 = vmul.f32 1.0, %v1719
    %v1721 = vmul.f32 %v1720, 2.0
    %v1722 = vsub.f32 %v1721, 1.0
    %v1724 = vrot.slane %v1615, 7
    %v1726 = vmul.f32 %v1718, %v1724
    %v1727 = vmul.f32 %v1718, %v1722
    %1729 = vrot.lane.b32.xlu0 %v1727, 64
    %v1730 = vpop.permute.xlu0 %1729
    %v1732 = vadd.f32 %v1726, %v1730
    %v1733 = vtanh.pop %v1732
    %v1734 = vmul.f32 %v1720, %v1733
    %v1736 = vrot.slane %v1734, 3
    %1737 = vrot.lane.b32.xlu0 %v1736, 64
    %v1738 = vpop.permute.xlu0 %1737
    %v1739 = vsel %vm239, %v1738, 0
    %1741 = vmatprep.subr.mxu0 0.0
    %1742 = vmatpush1.msra.mxu0 0.0
    %1743 = vmatprep.subr.mxu0 0.0
    %1744 = vmatpush1.msra.mxu0 0.0
    %1745 = vmatprep.subr.mxu0 0.0
    %1746 = vmatpush1.msra.mxu0 0.0
    %1747 = vmatprep.subr.mxu0 0.0
    %1748 = vmatpush1.msra.mxu0 0.0
    %1749 = vmatprep.subr.mxu0 0.0
    %1750 = vmatpush1.msra.mxu0 0.0
    %1751 = vmatprep.subr.mxu0 0.0
    %1752 = vmatpush1.msra.mxu0 0.0
    %1753 = vmatprep.subr.mxu0 0.0
    %1754 = vmatpush1.msra.mxu0 0.0
    %1755 = vmatprep.subr.mxu0 0.0
    %1756 = vmatpush1.msra.mxu0 0.0
    %1757 = vmatprep.subr.mxu0 %v1194
    %1758 = vmatpush1.msra.mxu0 %v1193
    %1759 = vmatprep.subr.mxu0 %v1192
    %1760 = vmatpush1.msra.mxu0 %v1191
    %1761 = vmatprep.subr.mxu0 %v1190
    %1762 = vmatpush1.msra.mxu0 %v1189
    %1763 = vmatprep.subr.mxu0 %v1188
    %1764 = vmatpush1.msra.mxu0 %v1187
    %1765 = vmatprep.subr.mxu0 %v1186
    %1766 = vmatpush1.msra.mxu0 %v1185
    %1767 = vmatprep.subr.mxu0 %v1184
    %1768 = vmatpush1.msra.mxu0 %v1183
    %1769 = vmatprep.subr.mxu0 %v1182
    %1770 = vmatpush1.msra.mxu0 %v1181
    %1771 = vmatprep.subr.mxu0 %v1180
    %1772 = vmatpush1.msra.mxu0 %v1179
    %1773 = vmatprep.subr.mxu0 0.0
    %1774 = vmatpush2.msra.mxu0 0.0
    %1775 = vmatprep.subr.mxu0 0.0
    %1776 = vmatpush2.msra.mxu0 0.0
    %1777 = vmatprep.subr.mxu0 0.0
    %1778 = vmatpush2.msra.mxu0 0.0
    %1779 = vmatprep.subr.mxu0 0.0
    %1780 = vmatpush2.msra.mxu0 0.0
    %1781 = vmatprep.subr.mxu0 0.0
    %1782 = vmatpush2.msra.mxu0 0.0
    %1783 = vmatprep.subr.mxu0 0.0
    %1784 = vmatpush2.msra.mxu0 0.0
    %1785 = vmatprep.subr.mxu0 0.0
    %1786 = vmatpush2.msra.mxu0 0.0
    %1787 = vmatprep.subr.mxu0 0.0
    %1788 = vmatpush2.msra.mxu0 0.0
    %1789 = vmatprep.subr.mxu0 0.0
    %1790 = vmatpush2.msra.mxu0 0.0
    %1791 = vmatprep.subr.mxu0 0.0
    %1792 = vmatpush2.msra.mxu0 0.0
    %1793 = vmatprep.subr.mxu0 0.0
    %1794 = vmatpush2.msra.mxu0 0.0
    %1795 = vmatprep.subr.mxu0 0.0
    %1796 = vmatpush2.msra.mxu0 0.0
    %1797 = vmatprep.subr.mxu0 0.0
    %1798 = vmatpush2.msra.mxu0 0.0
    %1799 = vmatprep.subr.mxu0 0.0
    %1800 = vmatpush2.msra.mxu0 0.0
    %1801 = vmatprep.subr.mxu0 0.0
    %1802 = vmatpush2.msra.mxu0 0.0
    %1803 = vmatprep.subr.mxu0 0.0
    %1804 = vmatpush2.msra.mxu0 0.0
    %1805 = vmatprep.mubr.f32.mxu0 0.0
    %1806 = vmatmul.mubr.f32.gmra.mxu0 %v1739
    %v1807 = vpop.f32.mrf.mxu0
    %v1808 = vadd.f32 0.0, %v1807
    %v1809 = vpop.f32.mrf.mxu0
    %v1810 = vadd.f32 0.0, %v1809
    %1811 = vdwg.mxu0
    %v1814 = vrot.slane %v1808, 4
    %v1815 = vrot.slane %v1810, 4
    %v1818 = vadd.f32 %v1287, %v1814
    %v1819 = vadd.f32 %v1288, %v1815
    %v1820 = vxor.u32 %v1818, 2147483648
    %v1821 = vxor.u32 %v1819, 2147483648
    %v1822 = vmul.f32 %v1820, 1.442695
    %v1823 = vpow.pop %v1822
    %v1824 = vmul.f32 %v1821, 1.442695
    %v1825 = vpow.pop %v1824
    %v1826 = vadd.f32 %v1823, 1.0
    %v1827 = vadd.f32 %v1825, 1.0
    %v1828 = vrcp.pop %v1826
    %v1829 = vmul.f32 1.0, %v1828
    %v1830 = vrcp.pop %v1827
    %v1831 = vmul.f32 1.0, %v1830
    %v1832 = vmul.f32 %v1831, 2.0
    %v1833 = vsub.f32 %v1832, 1.0
    %v1835 = vrot.slane %v1732, 7
    %v1837 = vmul.f32 %v1829, %v1835
    %v1838 = vmul.f32 %v1829, %v1833
    %1840 = vrot.lane.b32.xlu0 %v1838, 64
    %v1841 = vpop.permute.xlu0 %1840
    %v1843 = vadd.f32 %v1837, %v1841
    %v1844 = vtanh.pop %v1843
    %v1845 = vmul.f32 %v1831, %v1844
    %v1847 = vrot.slane %v1845, 4
    %1848 = vrot.lane.b32.xlu0 %v1847, 64
    %v1849 = vpop.permute.xlu0 %1848
    %v1850 = vsel %vm239, %v1849, 0
    %1852 = vmatprep.subr.mxu0 0.0
    %1853 = vmatpush1.msra.mxu0 0.0
    %1854 = vmatprep.subr.mxu0 0.0
    %1855 = vmatpush1.msra.mxu0 0.0
    %1856 = vmatprep.subr.mxu0 0.0
    %1857 = vmatpush1.msra.mxu0 0.0
    %1858 = vmatprep.subr.mxu0 0.0
    %1859 = vmatpush1.msra.mxu0 0.0
    %1860 = vmatprep.subr.mxu0 0.0
    %1861 = vmatpush1.msra.mxu0 0.0
    %1862 = vmatprep.subr.mxu0 0.0
    %1863 = vmatpush1.msra.mxu0 0.0
    %1864 = vmatprep.subr.mxu0 0.0
    %1865 = vmatpush1.msra.mxu0 0.0
    %1866 = vmatprep.subr.mxu0 0.0
    %1867 = vmatpush1.msra.mxu0 0.0
    %1868 = vmatprep.subr.mxu0 %v1194
    %1869 = vmatpush1.msra.mxu0 %v1193
    %1870 = vmatprep.subr.mxu0 %v1192
    %1871 = vmatpush1.msra.mxu0 %v1191
    %1872 = vmatprep.subr.mxu0 %v1190
    %1873 = vmatpush1.msra.mxu0 %v1189
    %1874 = vmatprep.subr.mxu0 %v1188
    %1875 = vmatpush1.msra.mxu0 %v1187
    %1876 = vmatprep.subr.mxu0 %v1186
    %1877 = vmatpush1.msra.mxu0 %v1185
    %1878 = vmatprep.subr.mxu0 %v1184
    %1879 = vmatpush1.msra.mxu0 %v1183
    %1880 = vmatprep.subr.mxu0 %v1182
    %1881 = vmatpush1.msra.mxu0 %v1181
    %1882 = vmatprep.subr.mxu0 %v1180
    %1883 = vmatpush1.msra.mxu0 %v1179
    %1884 = vmatprep.subr.mxu0 0.0
    %1885 = vmatpush2.msra.mxu0 0.0
    %1886 = vmatprep.subr.mxu0 0.0
    %1887 = vmatpush2.msra.mxu0 0.0
    %1888 = vmatprep.subr.mxu0 0.0
    %1889 = vmatpush2.msra.mxu0 0.0
    %1890 = vmatprep.subr.mxu0 0.0
    %1891 = vmatpush2.msra.mxu0 0.0
    %1892 = vmatprep.subr.mxu0 0.0
    %1893 = vmatpush2.msra.mxu0 0.0
    %1894 = vmatprep.subr.mxu0 0.0
    %1895 = vmatpush2.msra.mxu0 0.0
    %1896 = vmatprep.subr.mxu0 0.0
    %1897 = vmatpush2.msra.mxu0 0.0
    %1898 = vmatprep.subr.mxu0 0.0
    %1899 = vmatpush2.msra.mxu0 0.0
    %1900 = vmatprep.subr.mxu0 0.0
    %1901 = vmatpush2.msra.mxu0 0.0
    %1902 = vmatprep.subr.mxu0 0.0
    %1903 = vmatpush2.msra.mxu0 0.0
    %1904 = vmatprep.subr.mxu0 0.0
    %1905 = vmatpush2.msra.mxu0 0.0
    %1906 = vmatprep.subr.mxu0 0.0
    %1907 = vmatpush2.msra.mxu0 0.0
    %1908 = vmatprep.subr.mxu0 0.0
    %1909 = vmatpush2.msra.mxu0 0.0
    %1910 = vmatprep.subr.mxu0 0.0
    %1911 = vmatpush2.msra.mxu0 0.0
    %1912 = vmatprep.subr.mxu0 0.0
    %1913 = vmatpush2.msra.mxu0 0.0
    %1914 = vmatprep.subr.mxu0 0.0
    %1915 = vmatpush2.msra.mxu0 0.0
    %1916 = vmatprep.mubr.f32.mxu0 0.0
    %1917 = vmatmul.mubr.f32.gmra.mxu0 %v1850
    %v1918 = vpop.f32.mrf.mxu0
    %v1919 = vadd.f32 0.0, %v1918
    %v1920 = vpop.f32.mrf.mxu0
    %v1921 = vadd.f32 0.0, %v1920
    %1922 = vdwg.mxu0
    %v1925 = vrot.slane %v1919, 3
    %v1926 = vrot.slane %v1921, 3
    %v1929 = vadd.f32 %v1389, %v1925
    %v1930 = vadd.f32 %v1390, %v1926
    %v1931 = vxor.u32 %v1929, 2147483648
    %v1932 = vxor.u32 %v1930, 2147483648
    %v1933 = vmul.f32 %v1931, 1.442695
    %v1934 = vpow.pop %v1933
    %v1935 = vmul.f32 %v1932, 1.442695
    %v1936 = vpow.pop %v1935
    %v1937 = vadd.f32 %v1934, 1.0
    %v1938 = vadd.f32 %v1936, 1.0
    %v1939 = vrcp.pop %v1937
    %v1940 = vmul.f32 1.0, %v1939
    %v1941 = vrcp.pop %v1938
    %v1942 = vmul.f32 1.0, %v1941
    %v1943 = vmul.f32 %v1942, 2.0
    %v1944 = vsub.f32 %v1943, 1.0
    %v1946 = vrot.slane %v1843, 7
    %v1948 = vmul.f32 %v1940, %v1946
    %v1949 = vmul.f32 %v1940, %v1944
    %1951 = vrot.lane.b32.xlu0 %v1949, 64
    %v1952 = vpop.permute.xlu0 %1951
    %v1954 = vadd.f32 %v1948, %v1952
    %v1955 = vtanh.pop %v1954
    %v1956 = vmul.f32 %v1942, %v1955
    %v1958 = vrot.slane %v1956, 5
    %1959 = vrot.lane.b32.xlu0 %v1958, 64
    %v1960 = vpop.permute.xlu0 %1959
    %v1961 = vsel %vm239, %v1960, 0
    %1963 = vmatprep.subr.mxu0 0.0
    %1964 = vmatpush1.msra.mxu0 0.0
    %1965 = vmatprep.subr.mxu0 0.0
    %1966 = vmatpush1.msra.mxu0 0.0
    %1967 = vmatprep.subr.mxu0 0.0
    %1968 = vmatpush1.msra.mxu0 0.0
    %1969 = vmatprep.subr.mxu0 0.0
    %1970 = vmatpush1.msra.mxu0 0.0
    %1971 = vmatprep.subr.mxu0 0.0
    %1972 = vmatpush1.msra.mxu0 0.0
    %1973 = vmatprep.subr.mxu0 0.0
    %1974 = vmatpush1.msra.mxu0 0.0
    %1975 = vmatprep.subr.mxu0 0.0
    %1976 = vmatpush1.msra.mxu0 0.0
    %1977 = vmatprep.subr.mxu0 0.0
    %1978 = vmatpush1.msra.mxu0 0.0
    %1979 = vmatprep.subr.mxu0 %v1194
    %1980 = vmatpush1.msra.mxu0 %v1193
    %1981 = vmatprep.subr.mxu0 %v1192
    %1982 = vmatpush1.msra.mxu0 %v1191
    %1983 = vmatprep.subr.mxu0 %v1190
    %1984 = vmatpush1.msra.mxu0 %v1189
    %1985 = vmatprep.subr.mxu0 %v1188
    %1986 = vmatpush1.msra.mxu0 %v1187
    %1987 = vmatprep.subr.mxu0 %v1186
    %1988 = vmatpush1.msra.mxu0 %v1185
    %1989 = vmatprep.subr.mxu0 %v1184
    %1990 = vmatpush1.msra.mxu0 %v1183
    %1991 = vmatprep.subr.mxu0 %v1182
    %1992 = vmatpush1.msra.mxu0 %v1181
    %1993 = vmatprep.subr.mxu0 %v1180
    %1994 = vmatpush1.msra.mxu0 %v1179
    %1995 = vmatprep.subr.mxu0 0.0
    %1996 = vmatpush2.msra.mxu0 0.0
    %1997 = vmatprep.subr.mxu0 0.0
    %1998 = vmatpush2.msra.mxu0 0.0
    %1999 = vmatprep.subr.mxu0 0.0
    %2000 = vmatpush2.msra.mxu0 0.0
    %2001 = vmatprep.subr.mxu0 0.0
    %2002 = vmatpush2.msra.mxu0 0.0
    %2003 = vmatprep.subr.mxu0 0.0
    %2004 = vmatpush2.msra.mxu0 0.0
    %2005 = vmatprep.subr.mxu0 0.0
    %2006 = vmatpush2.msra.mxu0 0.0
    %2007 = vmatprep.subr.mxu0 0.0
    %2008 = vmatpush2.msra.mxu0 0.0
    %2009 = vmatprep.subr.mxu0 0.0
    %2010 = vmatpush2.msra.mxu0 0.0
    %2011 = vmatprep.subr.mxu0 0.0
    %2012 = vmatpush2.msra.mxu0 0.0
    %2013 = vmatprep.subr.mxu0 0.0
    %2014 = vmatpush2.msra.mxu0 0.0
    %2015 = vmatprep.subr.mxu0 0.0
    %2016 = vmatpush2.msra.mxu0 0.0
    %2017 = vmatprep.subr.mxu0 0.0
    %2018 = vmatpush2.msra.mxu0 0.0
    %2019 = vmatprep.subr.mxu0 0.0
    %2020 = vmatpush2.msra.mxu0 0.0
    %2021 = vmatprep.subr.mxu0 0.0
    %2022 = vmatpush2.msra.mxu0 0.0
    %2023 = vmatprep.subr.mxu0 0.0
    %2024 = vmatpush2.msra.mxu0 0.0
    %2025 = vmatprep.subr.mxu0 0.0
    %2026 = vmatpush2.msra.mxu0 0.0
    %2027 = vmatprep.mubr.f32.mxu0 0.0
    %2028 = vmatmul.mubr.f32.gmra.mxu0 %v1961
    %v2029 = vpop.f32.mrf.mxu0
    %v2030 = vadd.f32 0.0, %v2029
    %v2031 = vpop.f32.mrf.mxu0
    %v2032 = vadd.f32 0.0, %v2031
    %2033 = vdwg.mxu0
    %v2036 = vrot.slane %v2030, 2
    %v2037 = vrot.slane %v2032, 2
    %v2040 = vadd.f32 %v1505, %v2036
    %v2041 = vadd.f32 %v1506, %v2037
    %v2042 = vxor.u32 %v2040, 2147483648
    %v2043 = vxor.u32 %v2041, 2147483648
    %v2044 = vmul.f32 %v2042, 1.442695
    %v2045 = vpow.pop %v2044
    %v2046 = vmul.f32 %v2043, 1.442695
    %v2047 = vpow.pop %v2046
    %v2048 = vadd.f32 %v2045, 1.0
    %v2049 = vadd.f32 %v2047, 1.0
    %v2050 = vrcp.pop %v2048
    %v2051 = vmul.f32 1.0, %v2050
    %v2052 = vrcp.pop %v2049
    %v2053 = vmul.f32 1.0, %v2052
    %v2054 = vmul.f32 %v2053, 2.0
    %v2055 = vsub.f32 %v2054, 1.0
    %v2057 = vrot.slane %v1954, 7
    %v2059 = vmul.f32 %v2051, %v2057
    %v2060 = vmul.f32 %v2051, %v2055
    %2062 = vrot.lane.b32.xlu0 %v2060, 64
    %v2063 = vpop.permute.xlu0 %2062
    %v2065 = vadd.f32 %v2059, %v2063
    %v2066 = vtanh.pop %v2065
    %v2067 = vmul.f32 %v2053, %v2066
    %v2069 = vrot.slane %v2067, 6
    %2070 = vrot.lane.b32.xlu0 %v2069, 64
    %v2071 = vpop.permute.xlu0 %2070
    %v2072 = vsel %vm239, %v2071, 0
    %2074 = vmatprep.subr.mxu0 0.0
    %2075 = vmatpush1.msra.mxu0 0.0
    %2076 = vmatprep.subr.mxu0 0.0
    %2077 = vmatpush1.msra.mxu0 0.0
    %2078 = vmatprep.subr.mxu0 0.0
    %2079 = vmatpush1.msra.mxu0 0.0
    %2080 = vmatprep.subr.mxu0 0.0
    %2081 = vmatpush1.msra.mxu0 0.0
    %2082 = vmatprep.subr.mxu0 0.0
    %2083 = vmatpush1.msra.mxu0 0.0
    %2084 = vmatprep.subr.mxu0 0.0
    %2085 = vmatpush1.msra.mxu0 0.0
    %2086 = vmatprep.subr.mxu0 0.0
    %2087 = vmatpush1.msra.mxu0 0.0
    %2088 = vmatprep.subr.mxu0 0.0
    %2089 = vmatpush1.msra.mxu0 0.0
    %2090 = vmatprep.subr.mxu0 %v1194
    %2091 = vmatpush1.msra.mxu0 %v1193
    %2092 = vmatprep.subr.mxu0 %v1192
    %2093 = vmatpush1.msra.mxu0 %v1191
    %2094 = vmatprep.subr.mxu0 %v1190
    %2095 = vmatpush1.msra.mxu0 %v1189
    %2096 = vmatprep.subr.mxu0 %v1188
    %2097 = vmatpush1.msra.mxu0 %v1187
    %2098 = vmatprep.subr.mxu0 %v1186
    %2099 = vmatpush1.msra.mxu0 %v1185
    %2100 = vmatprep.subr.mxu0 %v1184
    %2101 = vmatpush1.msra.mxu0 %v1183
    %2102 = vmatprep.subr.mxu0 %v1182
    %2103 = vmatpush1.msra.mxu0 %v1181
    %2104 = vmatprep.subr.mxu0 %v1180
    %2105 = vmatpush1.msra.mxu0 %v1179
    %2106 = vmatprep.subr.mxu0 0.0
    %2107 = vmatpush2.msra.mxu0 0.0
    %2108 = vmatprep.subr.mxu0 0.0
    %2109 = vmatpush2.msra.mxu0 0.0
    %2110 = vmatprep.subr.mxu0 0.0
    %2111 = vmatpush2.msra.mxu0 0.0
    %2112 = vmatprep.subr.mxu0 0.0
    %2113 = vmatpush2.msra.mxu0 0.0
    %2114 = vmatprep.subr.mxu0 0.0
    %2115 = vmatpush2.msra.mxu0 0.0
    %2116 = vmatprep.subr.mxu0 0.0
    %2117 = vmatpush2.msra.mxu0 0.0
    %2118 = vmatprep.subr.mxu0 0.0
    %2119 = vmatpush2.msra.mxu0 0.0
    %2120 = vmatprep.subr.mxu0 0.0
    %2121 = vmatpush2.msra.mxu0 0.0
    %2122 = vmatprep.subr.mxu0 0.0
    %2123 = vmatpush2.msra.mxu0 0.0
    %2124 = vmatprep.subr.mxu0 0.0
    %2125 = vmatpush2.msra.mxu0 0.0
    %2126 = vmatprep.subr.mxu0 0.0
    %2127 = vmatpush2.msra.mxu0 0.0
    %2128 = vmatprep.subr.mxu0 0.0
    %2129 = vmatpush2.msra.mxu0 0.0
    %2130 = vmatprep.subr.mxu0 0.0
    %2131 = vmatpush2.msra.mxu0 0.0
    %2132 = vmatprep.subr.mxu0 0.0
    %2133 = vmatpush2.msra.mxu0 0.0
    %2134 = vmatprep.subr.mxu0 0.0
    %2135 = vmatpush2.msra.mxu0 0.0
    %2136 = vmatprep.subr.mxu0 0.0
    %2137 = vmatpush2.msra.mxu0 0.0
    %2138 = vmatprep.mubr.f32.mxu0 0.0
    %2139 = vmatmul.mubr.f32.gmra.mxu0 %v2072
    %v2140 = vpop.f32.mrf.mxu0
    %v2141 = vadd.f32 0.0, %v2140
    %v2142 = vpop.f32.mrf.mxu0
    %v2143 = vadd.f32 0.0, %v2142
    %2144 = vdwg.mxu0
    %v2147 = vrot.slane %v2141, 1
    %v2148 = vrot.slane %v2143, 1
    %v2151 = vadd.f32 %v1622, %v2147
    %v2152 = vadd.f32 %v1623, %v2148
    %v2153 = vxor.u32 %v2151, 2147483648
    %v2154 = vxor.u32 %v2152, 2147483648
    %v2155 = vmul.f32 %v2153, 1.442695
    %v2156 = vpow.pop %v2155
    %v2157 = vmul.f32 %v2154, 1.442695
    %v2158 = vpow.pop %v2157
    %v2159 = vadd.f32 %v2156, 1.0
    %v2160 = vadd.f32 %v2158, 1.0
    %v2161 = vrcp.pop %v2159
    %v2162 = vmul.f32 1.0, %v2161
    %v2163 = vrcp.pop %v2160
    %v2164 = vmul.f32 1.0, %v2163
    %v2165 = vmul.f32 %v2164, 2.0
    %v2166 = vsub.f32 %v2165, 1.0
    %v2168 = vrot.slane %v2065, 7
    %v2170 = vmul.f32 %v2162, %v2168
    %v2171 = vmul.f32 %v2162, %v2166
    %2173 = vrot.lane.b32.xlu0 %v2171, 64
    %v2174 = vpop.permute.xlu0 %2173
    %v2176 = vadd.f32 %v2170, %v2174
    %v2177 = vtanh.pop %v2176
    %v2178 = vmul.f32 %v2164, %v2177
    %v2181 = vrot.slane %v2178, 7
    %2182 = vrot.lane.b32.xlu0 %v2181, 64
    %v2183 = vpop.permute.xlu0 %2182
    %v2185 = vsel %vm122, %v1393, %v2183
    %2186 = vst.msk [vmem:[#allocation11] sm:$0x1] %vm1140, %v2185
    %v2189 = vsel %vm122, %v1510, %v2071
    %2190 = vst.msk [vmem:[#allocation11 + $0x1] sm:$0x1] %vm1140, %v2189
    %v2193 = vsel %vm122, %v1627, %v1960
    %2194 = vst.msk [vmem:[#allocation11 + $0x2] sm:$0x1] %vm1140, %v2193
    %v2197 = vsel %vm122, %v1738, %v1849
    %2198 = vst.msk [vmem:[#allocation11 + $0x3] sm:$0x1] %vm1140, %v2197
    %v2199 = vsel %vm122, %v1849, %v1738
    %2200 = vst.msk [vmem:[#allocation11 + $0x4] sm:$0x1] %vm1140, %v2199
    %v2201 = vsel %vm122, %v1960, %v1627
    %2202 = vst.msk [vmem:[#allocation11 + $0x5] sm:$0x1] %vm1140, %v2201
    %v2203 = vsel %vm122, %v2071, %v1510
    %2204 = vst.msk [vmem:[#allocation11 + $0x6] sm:$0x1] %vm1140, %v2203
    %v2205 = vsel %vm122, %v2183, %v1393
    %2206 = vst.msk [vmem:[#allocation11 + $0x7] sm:$0x1] %vm1140, %v2205
    // Predicated region
    $region50: #{tpu_custom_call.1} parent=1 // pred_check
      _
    $region51: #{tpu_custom_call.1} parent=1 // pred_check_branch
      %2208 = sbr.rel (0) target = $region53
    $region52: #{tpu_custom_call.1} parent=1 // pred_region
      %s2210 = ssub.s32 128, 128
      %2211 = vsyncadd [#allocation4], %s2210
      %s2213 = sshll.u32 [#allocation11], 4
      %s2214 = int_to_ptr.vmem [resolvable:$true] %s2213
      %2216 = dma.vmem_to_hbm [thread:$0]  %s2214, 128, %s7, [#allocation4]
    $region53: #{tpu_custom_call.1} parent=1 // pred_fallthru
      _
    // Predicated region
    $region54: #{tpu_custom_call.1} parent=1 // pred_check
      _
    $region55: #{tpu_custom_call.1} parent=1 // pred_check_branch
      %2218 = sbr.rel (0) target = $region57
    $region56: #{tpu_custom_call.1} parent=1 // pred_region
      %2219 = dma.done [#allocation4], 128
    $region57: #{tpu_custom_call.1} parent=1 // pred_fallthru
      _
    %2220 = vsyncpa [#allocation3], 1
    %2221 = vsyncpa [#allocation6], 1
    %2222 = vsyncpa [#allocation9], 1
    %2223 = vsyncpa [#allocation4], 1

</llo_original>
